<compile_context>
chip_gen: v7x
topology: tpu7x:2x2x1
jax: 0.10.0
libtpu: 0.0.40
codegen_flags: <defaults>
</compile_context>

<pallas_src>
import math
import jax
import jax.numpy as jnp
from jax import lax
from jax.experimental import pallas as pl
from jax.experimental.pallas import tpu as pltpu

# ----------------------- small, module-consistent config -----------------------
B = 2                 # batch
C_IN = 2              # raw sample channels (encoder input)
D_, H_, W_ = 4, 8, 8  # 3D spatial dims
S = D_ * H_ * W_      # flattened spatial size = 256
ENC_FEATS = 8         # encoder.num_features
HIDDEN = 32           # config.MODEL.DECODER.HIDDEN_DIM
OBJ_TOKEN = 4         # config.MODEL.DECODER.OBJ_TOKEN
RLN_TOKEN = 1         # config.MODEL.DECODER.RLN_TOKEN
DUMMY_TOKEN = 0       # config.MODEL.DECODER.DUMMY_TOKEN
NUM_QUERIES = OBJ_TOKEN + RLN_TOKEN + DUMMY_TOKEN   # 5
NUM_CLASSES = 5       # class_embed output dim
COORD_DIM = 6         # coord_embed output dim

Q_PAD = 8             # sublane-dense padding of the 5 query tokens
HEAD_PAD = 128        # lane-dense padding of the 5/6/32-wide outputs
OUT_COLS = 3 * HEAD_PAD   # merged output: [h | class | coord] stripes

# --- "mats" slab layout: (HIDDEN, 5*128), 128-aligned column stripes ---
COL_WP = 0            # input_proj weight   (HIDDEN, ENC_FEATS)   cols [0, 8)
COL_WC = 128          # class head weight   (HIDDEN, NUM_CLASSES) cols [128, 133)
COL_W1 = 256          # coord MLP layer 1   (HIDDEN, HIDDEN)
COL_W2 = 384          # coord MLP layer 2   (HIDDEN, HIDDEN)
COL_W3 = 512          # coord MLP layer 3   (HIDDEN, COORD_DIM)
MATS_COLS = 640

# --- "vecs" slab layout: (56, 128) ---
ROW_Q = 0             # rows [0, 8)  : query_embed (padded)       cols [0, HIDDEN)
ROW_WE = 8            # rows [8, 16) : encoder conv w (ENC_FEATS, C_IN) cols [0,2), bias col 2
ROW_BP = 16           # rows [16,48) : input_proj bias (HIDDEN, 1) col 0
ROW_BC = 48           # class head bias  (1, 128 padded)
ROW_B1 = 49           # coord MLP bias 1 (1, HIDDEN)
ROW_B2 = 50           # coord MLP bias 2 (1, HIDDEN)
ROW_B3 = 51           # coord MLP bias 3 (1, 128 padded)
VECS_ROWS = 56


# ------------------------------ fused Pallas kernel ----------------------------
def relationformer_kernel(x_ref, qpos_ref, mats_ref, vecs_ref, out_ref):
    """Single grid step; whole problem (both batch elements) per invocation."""
    inv_sqrt_d = 1.0 / math.sqrt(HIDDEN)

    # ---- unpack the two parameter slabs with static (zero-cost) slices ----
    q = vecs_ref[ROW_Q:ROW_Q + Q_PAD, 0:HIDDEN]                   # (8, 32)  queries (padded)
    we = vecs_ref[ROW_WE:ROW_WE + ENC_FEATS, 0:C_IN]              # (8, 2)   encoder conv weight
    be = vecs_ref[ROW_WE:ROW_WE + ENC_FEATS, C_IN:C_IN + 1]       # (8, 1)   encoder conv bias
    bp = vecs_ref[ROW_BP:ROW_BP + HIDDEN, 0:1]                    # (32, 1)  input_proj bias
    bc = vecs_ref[ROW_BC:ROW_BC + 1, :]                           # (1, 128) class bias (padded)
    b1 = vecs_ref[ROW_B1:ROW_B1 + 1, 0:HIDDEN]                    # (1, 32)
    b2 = vecs_ref[ROW_B2:ROW_B2 + 1, 0:HIDDEN]                    # (1, 32)
    b3 = vecs_ref[ROW_B3:ROW_B3 + 1, :]                           # (1, 128) coord bias (padded)

    wp = mats_ref[:, COL_WP:COL_WP + ENC_FEATS]                   # (32, 8)   input_proj weight
    wc = mats_ref[:, COL_WC:COL_WC + HEAD_PAD]                    # (32, 128) class weight (padded)
    w1 = mats_ref[:, COL_W1:COL_W1 + HIDDEN]                      # (32, 32)
    w2 = mats_ref[:, COL_W2:COL_W2 + HIDDEN]                      # (32, 32)
    w3 = mats_ref[:, COL_W3:COL_W3 + HEAD_PAD]                    # (32, 128) coord weight (padded)

    qpos = qpos_ref[...]                                          # (8, S) constant logit bias
    zeros_h_pad = jnp.zeros((Q_PAD, HEAD_PAD - HIDDEN), jnp.float32)

    # static unroll over the (tiny) batch -- one grid step total
    for b in range(B):
        x = x_ref[b, :, :]                                        # (C_IN, S) channel-major

        # ---- encoder stand-in: 1x1x1 conv, K=C_IN=2 -> VPU broadcast-FMA (no MXU) ----
        feat = be + we[:, 0:1] * x[0:1, :]                        # (ENC_FEATS, S)
        for c in range(1, C_IN):                                  # static tiny unroll
            feat = feat + we[:, c:c + 1] * x[c:c + 1, :]
        feat = jnp.maximum(feat, 0.0)

        # ---- input_proj (Conv3d k=1), channel-major, on the MXU ----
        proj = jnp.dot(wp, feat, preferred_element_type=jnp.float32) + bp   # (HIDDEN, S)

        # ---- decoder stand-in: single cross-attention with residual on the queries ----
        # keys = proj + pos; the constant pos term is folded into the precomputed qpos.
        s = jnp.dot(q, proj, preferred_element_type=jnp.float32) * inv_sqrt_d + qpos  # (8, S)
        m = jnp.max(s, axis=-1, keepdims=True)                    # XLU lane reduction
        p = jnp.exp(s - m)
        p = p * pl.reciprocal(jnp.sum(p, axis=-1, keepdims=True), approx=True)  # EUP
        # values = proj (no pos), matching the stand-in semantics; NT dot_general keeps
        # proj un-transposed in VMEM (operand orientation handled in matmul lowering).
        attn = lax.dot_general(p, proj, (((1,), (1,)), ((), ())),
                               preferred_element_type=jnp.float32)            # (8, 32)
        h = q + attn                                              # (Q_PAD, HIDDEN)

        # ---- prediction heads (all padded token rows; wrapper slices obj tokens) ----
        cls = jnp.dot(h, wc, preferred_element_type=jnp.float32) + bc         # (8, 128)
        h1 = jnp.maximum(jnp.dot(h, w1, preferred_element_type=jnp.float32) + b1, 0.0)
        h2 = jnp.maximum(jnp.dot(h1, w2, preferred_element_type=jnp.float32) + b2, 0.0)
        coord = jax.nn.sigmoid(
            jnp.dot(h2, w3, preferred_element_type=jnp.float32) + b3)         # (8, 128)

        # ---- single merged output: three 128-aligned lane stripes (unmasked stores) ----
        out_ref[b, :, 0:HEAD_PAD] = jnp.concatenate([h, zeros_h_pad], axis=-1)
        out_ref[b, :, HEAD_PAD:2 * HEAD_PAD] = cls
        out_ref[b, :, 2 * HEAD_PAD:3 * HEAD_PAD] = coord


def relationformer_pallas(x_bcs, qpos, mats, vecs):
    """x_bcs: (B, C_IN, S) channel-major rows (free reshape of NCDHW);
    qpos: (Q_PAD, S) precomputed scaled query@pos^T logit bias;
    mats/vecs: packed parameter slabs. Single grid step, full-array VMEM blocks."""
    vmem = lambda: pl.BlockSpec(memory_space=pltpu.MemorySpace.VMEM)
    return pl.pallas_call(
        relationformer_kernel,
        out_shape=jax.ShapeDtypeStruct((B, Q_PAD, OUT_COLS), jnp.float32),
        in_specs=[vmem(), vmem(), vmem(), vmem()],
        out_specs=vmem(),
    )(x_bcs, qpos, mats, vecs)


# ----------------------------- plain-JAX glue ----------------------------------
def position_embedding_sine_3d(mask, channels, temperature=10000.0):
    """3D sine position embedding; returns channels-last [B, D, H, W, channels]."""
    not_mask = (~mask).astype(jnp.float32)
    z = jnp.cumsum(not_mask, axis=1)
    y = jnp.cumsum(not_mask, axis=2)
    x = jnp.cumsum(not_mask, axis=3)
    eps = 1e-6
    scale = 2.0 * math.pi
    z = z / (z[:, -1:, :, :] + eps) * scale
    y = y / (y[:, :, -1:, :] + eps) * scale
    x = x / (x[:, :, :, -1:] + eps) * scale
    n = channels // 3
    dim_t = jnp.arange(n, dtype=jnp.float32)
    dim_t = temperature ** (2.0 * jnp.floor(dim_t / 2.0) / n)

    def enc(e):
        p = e[..., None] / dim_t
        return jnp.concatenate([jnp.sin(p[..., 0::2]), jnp.cos(p[..., 1::2])], axis=-1)

    pos = jnp.concatenate([enc(z), enc(y), enc(x)], axis=-1)
    pad = channels - pos.shape[-1]
    if pad > 0:
        pos = jnp.concatenate(
            [pos, jnp.zeros(pos.shape[:-1] + (pad,), jnp.float32)], axis=-1)
    return pos


def init_params(key):
    """Deterministic PyTorch-default-style init (uniform +-1/sqrt(fan_in); Embedding ~ N(0,1))."""
    keys = jax.random.split(key, 32)
    it = iter(keys)

    def linear(fan_in, fan_out):
        bound = 1.0 / math.sqrt(fan_in)
        w = jax.random.uniform(next(it), (fan_in, fan_out), jnp.float32, -bound, bound)
        b = jax.random.uniform(next(it), (1, fan_out), jnp.float32, -bound, bound)
        return w, b

    p = {}
    p["enc_w"], p["enc_b"] = linear(C_IN, ENC_FEATS)            # encoder stand-in (1x1x1 conv)
    p["proj_w"], p["proj_b"] = linear(ENC_FEATS, HIDDEN)        # input_proj (Conv3d k=1)
    p["query_embed"] = jax.random.normal(next(it), (NUM_QUERIES, HIDDEN), jnp.float32)
    p["cls_w"], p["cls_b"] = linear(HIDDEN, NUM_CLASSES)        # class_embed
    p["c1_w"], p["c1_b"] = linear(HIDDEN, HIDDEN)               # coord_embed MLP
    p["c2_w"], p["c2_b"] = linear(HIDDEN, HIDDEN)
    p["c3_w"], p["c3_b"] = linear(HIDDEN, COORD_DIM)
    # relation_embed exists in __init__ (HIDDEN*3 -> HIDDEN -> HIDDEN -> 2) but is not
    # used in forward(); initialized for fidelity, unused below.
    p["r1_w"], p["r1_b"] = linear(HIDDEN * 3, HIDDEN)
    p["r2_w"], p["r2_b"] = linear(HIDDEN, HIDDEN)
    p["r3_w"], p["r3_b"] = linear(HIDDEN, 2)
    return p


def pack_params_for_kernel(p, pos_flat):
    """One-time packing of the 15 tiny parameters into two dense slabs (mats, vecs),
    plus the precomputed constant attention-logit bias qpos. Runs once at init."""
    # mats slab: the (HIDDEN, .) matmul weights in 128-aligned column stripes.
    mats = jnp.zeros((HIDDEN, MATS_COLS), jnp.float32)
    mats = mats.at[:, COL_WP:COL_WP + ENC_FEATS].set(p["proj_w"].T)       # channel-major
    mats = mats.at[:, COL_WC:COL_WC + NUM_CLASSES].set(p["cls_w"])
    mats = mats.at[:, COL_W1:COL_W1 + HIDDEN].set(p["c1_w"])
    mats = mats.at[:, COL_W2:COL_W2 + HIDDEN].set(p["c2_w"])
    mats = mats.at[:, COL_W3:COL_W3 + COORD_DIM].set(p["c3_w"])

    # vecs slab: query embedding, encoder conv, and all biases.
    vecs = jnp.zeros((VECS_ROWS, 128), jnp.float32)
    vecs = vecs.at[ROW_Q:ROW_Q + NUM_QUERIES, 0:HIDDEN].set(p["query_embed"])
    vecs = vecs.at[ROW_WE:ROW_WE + ENC_FEATS, 0:C_IN].set(p["enc_w"].T)   # channel-major
    vecs = vecs.at[ROW_WE:ROW_WE + ENC_FEATS, C_IN:C_IN + 1].set(p["enc_b"].T)
    vecs = vecs.at[ROW_BP:ROW_BP + HIDDEN, 0:1].set(p["proj_b"].T)
    vecs = vecs.at[ROW_BC, 0:NUM_CLASSES].set(p["cls_b"][0])
    vecs = vecs.at[ROW_B1, 0:HIDDEN].set(p["c1_b"][0])
    vecs = vecs.at[ROW_B2, 0:HIDDEN].set(p["c2_b"][0])
    vecs = vecs.at[ROW_B3, 0:COORD_DIM].set(p["c3_b"][0])

    # Constant attention-logit bias: both query_embed and the sine pos embedding are
    # constants, so scale * q @ pos^T is exact and can be hoisted out of the kernel.
    qe_pad = jnp.zeros((Q_PAD, HIDDEN), jnp.float32).at[:NUM_QUERIES].set(p["query_embed"])
    qpos = (qe_pad @ pos_flat.T) * (1.0 / math.sqrt(HIDDEN))              # (Q_PAD, S)

    return {"mats": mats, "vecs": vecs, "qpos": qpos}


def relationformer_forward(samples, kp):
    """samples: [B, C_IN, D, H, W] (NCDHW, matching the PyTorch calling convention)."""
    # NCDHW -> (B, C_IN, S): contiguous (free) reshape, channel-major with S on lanes.
    x_bcs = samples.reshape(B, C_IN, S)

    out = relationformer_pallas(x_bcs, kp["qpos"], kp["mats"], kp["vecs"])   # (B, 8, 384)

    h = out[:, :NUM_QUERIES, :HIDDEN]                                       # (B, 5, 32)
    class_prob = out[:, :OBJ_TOKEN, HEAD_PAD:HEAD_PAD + NUM_CLASSES]        # (B, 4, 5)
    coord_loc = out[:, :OBJ_TOKEN, 2 * HEAD_PAD:2 * HEAD_PAD + COORD_DIM]   # (B, 4, 6)

    return h, {"pred_logits": class_prob, "pred_nodes": coord_loc}


if __name__ == "__main__":
    key = jax.random.PRNGKey(0)
    pkey, dkey = jax.random.split(key)
    params = init_params(pkey)

    # mask is a constant all-False tensor (as in the reference) -> pos is input-
    # independent; compute it once (same for every batch element) outside the kernel.
    mask1 = jnp.zeros((1, D_, H_, W_), dtype=bool)
    pos_flat = position_embedding_sine_3d(mask1, HIDDEN).reshape(S, HIDDEN)
    kparams = pack_params_for_kernel(params, pos_flat)

    samples = jax.random.normal(dkey, (B, C_IN, D_, H_, W_), jnp.float32)

    fwd = jax.jit(relationformer_forward)
    h, out = fwd(samples, kparams)
    jax.block_until_ready((h, out))

    assert h.shape == (B, NUM_QUERIES, HIDDEN)
    assert out["pred_logits"].shape == (B, OBJ_TOKEN, NUM_CLASSES)
    assert out["pred_nodes"].shape == (B, OBJ_TOKEN, COORD_DIM)
    assert bool(jnp.all(out["pred_nodes"] >= 0.0)) and bool(jnp.all(out["pred_nodes"] <= 1.0))
    assert bool(jnp.all(jnp.isfinite(h)))
    print("KERNEL_OK")
</pallas_src>

<mosaic_0001>
module attributes {stable_mosaic.version = 11 : i64} {
  func.func @relationformer_kernel(%arg0: memref<2x2x256xf32, #tpu.memory_space<vmem>>, %arg1: memref<8x256xf32, #tpu.memory_space<vmem>>, %arg2: memref<32x640xf32, #tpu.memory_space<vmem>>, %arg3: memref<56x128xf32, #tpu.memory_space<vmem>>, %arg4: memref<2x8x384xf32, #tpu.memory_space<vmem>>) attributes {dimension_semantics = [], scalar_prefetch = 0 : i64, scratch_operands = 0 : i64, tpu.core_type = #tpu.core_type<tc>} {
    %c0 = arith.constant 0 : index
    %c0_0 = arith.constant 0 : index
    %0 = vector.load %arg3[%c0, %c0_0] : memref<56x128xf32, #tpu.memory_space<vmem>>, vector<8x32xf32>
    %c8 = arith.constant 8 : index
    %c0_1 = arith.constant 0 : index
    %1 = vector.load %arg3[%c8, %c0_1] : memref<56x128xf32, #tpu.memory_space<vmem>>, vector<8x2xf32>
    %c8_2 = arith.constant 8 : index
    %c2 = arith.constant 2 : index
    %2 = vector.load %arg3[%c8_2, %c2] : memref<56x128xf32, #tpu.memory_space<vmem>>, vector<8x1xf32>
    %c16 = arith.constant 16 : index
    %c0_3 = arith.constant 0 : index
    %3 = vector.load %arg3[%c16, %c0_3] : memref<56x128xf32, #tpu.memory_space<vmem>>, vector<32x1xf32>
    %c48 = arith.constant 48 : index
    %c0_4 = arith.constant 0 : index
    %4 = vector.load %arg3[%c48, %c0_4] : memref<56x128xf32, #tpu.memory_space<vmem>>, vector<1x128xf32>
    %c49 = arith.constant 49 : index
    %c0_5 = arith.constant 0 : index
    %5 = vector.load %arg3[%c49, %c0_5] : memref<56x128xf32, #tpu.memory_space<vmem>>, vector<1x32xf32>
    %c50 = arith.constant 50 : index
    %c0_6 = arith.constant 0 : index
    %6 = vector.load %arg3[%c50, %c0_6] : memref<56x128xf32, #tpu.memory_space<vmem>>, vector<1x32xf32>
    %c51 = arith.constant 51 : index
    %c0_7 = arith.constant 0 : index
    %7 = vector.load %arg3[%c51, %c0_7] : memref<56x128xf32, #tpu.memory_space<vmem>>, vector<1x128xf32>
    %c0_8 = arith.constant 0 : index
    %c0_9 = arith.constant 0 : index
    %8 = vector.load %arg2[%c0_8, %c0_9] : memref<32x640xf32, #tpu.memory_space<vmem>>, vector<32x8xf32>
    %c0_10 = arith.constant 0 : index
    %c128 = arith.constant 128 : index
    %9 = vector.load %arg2[%c0_10, %c128] : memref<32x640xf32, #tpu.memory_space<vmem>>, vector<32x128xf32>
    %c0_11 = arith.constant 0 : index
    %c256 = arith.constant 256 : index
    %10 = vector.load %arg2[%c0_11, %c256] : memref<32x640xf32, #tpu.memory_space<vmem>>, vector<32x32xf32>
    %c0_12 = arith.constant 0 : index
    %c384 = arith.constant 384 : index
    %11 = vector.load %arg2[%c0_12, %c384] : memref<32x640xf32, #tpu.memory_space<vmem>>, vector<32x32xf32>
    %c0_13 = arith.constant 0 : index
    %c512 = arith.constant 512 : index
    %12 = vector.load %arg2[%c0_13, %c512] : memref<32x640xf32, #tpu.memory_space<vmem>>, vector<32x128xf32>
    %c0_14 = arith.constant 0 : index
    %c0_15 = arith.constant 0 : index
    %13 = vector.load %arg1[%c0_14, %c0_15] : memref<8x256xf32, #tpu.memory_space<vmem>>, vector<8x256xf32>
    %cst = arith.constant 0.000000e+00 : f32
    %14 = vector.broadcast %cst : f32 to vector<8x96xf32>
    %c0_16 = arith.constant 0 : index
    %c0_17 = arith.constant 0 : index
    %c0_18 = arith.constant 0 : index
    %15 = vector.load %arg0[%c0_16, %c0_17, %c0_18] : memref<2x2x256xf32, #tpu.memory_space<vmem>>, vector<1x2x256xf32>
    %16 = vector.shape_cast %15 : vector<1x2x256xf32> to vector<2x256xf32>
    %17 = vector.extract_strided_slice %1 {offsets = [0, 0], sizes = [8, 1], strides = [1, 1]} : vector<8x2xf32> to vector<8x1xf32>
    %18 = vector.extract_strided_slice %16 {offsets = [0, 0], sizes = [1, 256], strides = [1, 1]} : vector<2x256xf32> to vector<1x256xf32>
    %19 = vector.broadcast %17 : vector<8x1xf32> to vector<8x256xf32>
    %20 = vector.broadcast %18 : vector<1x256xf32> to vector<8x256xf32>
    %21 = arith.mulf %19, %20 : vector<8x256xf32>
    %22 = vector.broadcast %2 : vector<8x1xf32> to vector<8x256xf32>
    %23 = arith.addf %22, %21 : vector<8x256xf32>
    %24 = vector.extract_strided_slice %1 {offsets = [0, 1], sizes = [8, 1], strides = [1, 1]} : vector<8x2xf32> to vector<8x1xf32>
    %25 = vector.extract_strided_slice %16 {offsets = [1, 0], sizes = [1, 256], strides = [1, 1]} : vector<2x256xf32> to vector<1x256xf32>
    %26 = vector.broadcast %24 : vector<8x1xf32> to vector<8x256xf32>
    %27 = vector.broadcast %25 : vector<1x256xf32> to vector<8x256xf32>
    %28 = arith.mulf %26, %27 : vector<8x256xf32>
    %29 = arith.addf %23, %28 : vector<8x256xf32>
    %cst_19 = arith.constant 0.000000e+00 : f32
    %30 = vector.broadcast %cst_19 : f32 to vector<8x256xf32>
    %31 = arith.maximumf %29, %30 : vector<8x256xf32>
    %cst_20 = arith.constant dense<0.000000e+00> : vector<32x256xf32>
    %32 = tpu.matmul %8, %31, %cst_20 {dimension_numbers = #tpu.dot_dimension_numbers<[1], [0], [0], [1], [0, 0, 1, 1], [], []>} : vector<32x8xf32>, vector<8x256xf32>, vector<32x256xf32> -> vector<32x256xf32>
    %33 = vector.broadcast %3 : vector<32x1xf32> to vector<32x256xf32>
    %34 = arith.addf %32, %33 : vector<32x256xf32>
    %cst_21 = arith.constant dense<0.000000e+00> : vector<8x256xf32>
    %35 = tpu.matmul %0, %34, %cst_21 {dimension_numbers = #tpu.dot_dimension_numbers<[1], [0], [0], [1], [0, 0, 1, 1], [], []>} : vector<8x32xf32>, vector<32x256xf32>, vector<8x256xf32> -> vector<8x256xf32>
    %cst_22 = arith.constant 0.176776692 : f32
    %36 = vector.broadcast %cst_22 : f32 to vector<8x256xf32>
    %37 = arith.mulf %35, %36 : vector<8x256xf32>
    %38 = arith.addf %37, %13 : vector<8x256xf32>
    %cst_23 = arith.constant dense<0xFF800000> : vector<8xf32>
    %39 = vector.multi_reduction <maximumf>, %38, %cst_23 [1] : vector<8x256xf32> to vector<8xf32>
    %40 = vector.shape_cast %39 : vector<8xf32> to vector<8x1xf32>
    %41 = vector.broadcast %40 : vector<8x1xf32> to vector<8x256xf32>
    %42 = arith.subf %38, %41 : vector<8x256xf32>
    %43 = math.exp %42 : vector<8x256xf32>
    %cst_24 = arith.constant dense<0.000000e+00> : vector<8xf32>
    %44 = vector.multi_reduction <add>, %43, %cst_24 [1] : vector<8x256xf32> to vector<8xf32>
    %45 = vector.shape_cast %44 : vector<8xf32> to vector<8x1xf32>
    %46 = tpu.reciprocal %45 {approx = true} : vector<8x1xf32> -> vector<8x1xf32>
    %47 = vector.broadcast %46 : vector<8x1xf32> to vector<8x256xf32>
    %48 = arith.mulf %43, %47 : vector<8x256xf32>
    %cst_25 = arith.constant dense<0.000000e+00> : vector<8x32xf32>
    %49 = tpu.matmul %48, %34, %cst_25 {dimension_numbers = #tpu.dot_dimension_numbers<[1], [1], [0], [0], [0, 0, 1, 0], [], []>} : vector<8x256xf32>, vector<32x256xf32>, vector<8x32xf32> -> vector<8x32xf32>
    %50 = arith.addf %0, %49 : vector<8x32xf32>
    %cst_26 = arith.constant dense<0.000000e+00> : vector<8x128xf32>
    %51 = tpu.matmul %50, %9, %cst_26 {dimension_numbers = #tpu.dot_dimension_numbers<[1], [0], [0], [1], [0, 0, 1, 1], [], []>} : vector<8x32xf32>, vector<32x128xf32>, vector<8x128xf32> -> vector<8x128xf32>
    %52 = vector.broadcast %4 : vector<1x128xf32> to vector<8x128xf32>
    %53 = arith.addf %51, %52 : vector<8x128xf32>
    %cst_27 = arith.constant dense<0.000000e+00> : vector<8x32xf32>
    %54 = tpu.matmul %50, %10, %cst_27 {dimension_numbers = #tpu.dot_dimension_numbers<[1], [0], [0], [1], [0, 0, 1, 1], [], []>} : vector<8x32xf32>, vector<32x32xf32>, vector<8x32xf32> -> vector<8x32xf32>
    %55 = vector.broadcast %5 : vector<1x32xf32> to vector<8x32xf32>
    %56 = arith.addf %54, %55 : vector<8x32xf32>
    %cst_28 = arith.constant 0.000000e+00 : f32
    %57 = vector.broadcast %cst_28 : f32 to vector<8x32xf32>
    %58 = arith.maximumf %56, %57 : vector<8x32xf32>
    %cst_29 = arith.constant dense<0.000000e+00> : vector<8x32xf32>
    %59 = tpu.matmul %58, %11, %cst_29 {dimension_numbers = #tpu.dot_dimension_numbers<[1], [0], [0], [1], [0, 0, 1, 1], [], []>} : vector<8x32xf32>, vector<32x32xf32>, vector<8x32xf32> -> vector<8x32xf32>
    %60 = vector.broadcast %6 : vector<1x32xf32> to vector<8x32xf32>
    %61 = arith.addf %59, %60 : vector<8x32xf32>
    %cst_30 = arith.constant 0.000000e+00 : f32
    %62 = vector.broadcast %cst_30 : f32 to vector<8x32xf32>
    %63 = arith.maximumf %61, %62 : vector<8x32xf32>
    %cst_31 = arith.constant dense<0.000000e+00> : vector<8x128xf32>
    %64 = tpu.matmul %63, %12, %cst_31 {dimension_numbers = #tpu.dot_dimension_numbers<[1], [0], [0], [1], [0, 0, 1, 1], [], []>} : vector<8x32xf32>, vector<32x128xf32>, vector<8x128xf32> -> vector<8x128xf32>
    %65 = vector.broadcast %7 : vector<1x128xf32> to vector<8x128xf32>
    %66 = arith.addf %64, %65 : vector<8x128xf32>
    %67 = arith.negf %66 : vector<8x128xf32>
    %68 = math.exp %67 : vector<8x128xf32>
    %cst_32 = arith.constant 1.000000e+00 : f32
    %69 = vector.broadcast %cst_32 : f32 to vector<8x128xf32>
    %70 = arith.addf %69, %68 : vector<8x128xf32>
    %71 = arith.divf %69, %70 : vector<8x128xf32>
    %72 = tpu.concatenate %50, %14 in 1 : vector<8x32xf32>, vector<8x96xf32> -> vector<8x128xf32>
    %c0_33 = arith.constant 0 : index
    %c0_34 = arith.constant 0 : index
    %c0_35 = arith.constant 0 : index
    %73 = vector.load %arg4[%c0_33, %c0_34, %c0_35] : memref<2x8x384xf32, #tpu.memory_space<vmem>>, vector<1x8x128xf32>
    %74 = vector.shape_cast %73 : vector<1x8x128xf32> to vector<8x128xf32>
    %75 = vector.shape_cast %72 : vector<8x128xf32> to vector<1x8x128xf32>
    tpu.vector_store %arg4[%c0_33, %c0_34, %c0_35], %75 {strides = array<i32>} : memref<2x8x384xf32, #tpu.memory_space<vmem>>, vector<1x8x128xf32>,
    %c0_36 = arith.constant 0 : index
    %c0_37 = arith.constant 0 : index
    %c128_38 = arith.constant 128 : index
    %76 = vector.load %arg4[%c0_36, %c0_37, %c128_38] : memref<2x8x384xf32, #tpu.memory_space<vmem>>, vector<1x8x128xf32>
    %77 = vector.shape_cast %76 : vector<1x8x128xf32> to vector<8x128xf32>
    %78 = vector.shape_cast %53 : vector<8x128xf32> to vector<1x8x128xf32>
    tpu.vector_store %arg4[%c0_36, %c0_37, %c128_38], %78 {strides = array<i32>} : memref<2x8x384xf32, #tpu.memory_space<vmem>>, vector<1x8x128xf32>,
    %c0_39 = arith.constant 0 : index
    %c0_40 = arith.constant 0 : index
    %c256_41 = arith.constant 256 : index
    %79 = vector.load %arg4[%c0_39, %c0_40, %c256_41] : memref<2x8x384xf32, #tpu.memory_space<vmem>>, vector<1x8x128xf32>
    %80 = vector.shape_cast %79 : vector<1x8x128xf32> to vector<8x128xf32>
    %81 = vector.shape_cast %71 : vector<8x128xf32> to vector<1x8x128xf32>
    tpu.vector_store %arg4[%c0_39, %c0_40, %c256_41], %81 {strides = array<i32>} : memref<2x8x384xf32, #tpu.memory_space<vmem>>, vector<1x8x128xf32>,
    %c1 = arith.constant 1 : index
    %c0_42 = arith.constant 0 : index
    %c0_43 = arith.constant 0 : index
    %82 = vector.load %arg0[%c1, %c0_42, %c0_43] : memref<2x2x256xf32, #tpu.memory_space<vmem>>, vector<1x2x256xf32>
    %83 = vector.shape_cast %82 : vector<1x2x256xf32> to vector<2x256xf32>
    %84 = vector.extract_strided_slice %1 {offsets = [0, 0], sizes = [8, 1], strides = [1, 1]} : vector<8x2xf32> to vector<8x1xf32>
    %85 = vector.extract_strided_slice %83 {offsets = [0, 0], sizes = [1, 256], strides = [1, 1]} : vector<2x256xf32> to vector<1x256xf32>
    %86 = vector.broadcast %84 : vector<8x1xf32> to vector<8x256xf32>
    %87 = vector.broadcast %85 : vector<1x256xf32> to vector<8x256xf32>
    %88 = arith.mulf %86, %87 : vector<8x256xf32>
    %89 = vector.broadcast %2 : vector<8x1xf32> to vector<8x256xf32>
    %90 = arith.addf %89, %88 : vector<8x256xf32>
    %91 = vector.extract_strided_slice %1 {offsets = [0, 1], sizes = [8, 1], strides = [1, 1]} : vector<8x2xf32> to vector<8x1xf32>
    %92 = vector.extract_strided_slice %83 {offsets = [1, 0], sizes = [1, 256], strides = [1, 1]} : vector<2x256xf32> to vector<1x256xf32>
    %93 = vector.broadcast %91 : vector<8x1xf32> to vector<8x256xf32>
    %94 = vector.broadcast %92 : vector<1x256xf32> to vector<8x256xf32>
    %95 = arith.mulf %93, %94 : vector<8x256xf32>
    %96 = arith.addf %90, %95 : vector<8x256xf32>
    %cst_44 = arith.constant 0.000000e+00 : f32
    %97 = vector.broadcast %cst_44 : f32 to vector<8x256xf32>
    %98 = arith.maximumf %96, %97 : vector<8x256xf32>
    %cst_45 = arith.constant dense<0.000000e+00> : vector<32x256xf32>
    %99 = tpu.matmul %8, %98, %cst_45 {dimension_numbers = #tpu.dot_dimension_numbers<[1], [0], [0], [1], [0, 0, 1, 1], [], []>} : vector<32x8xf32>, vector<8x256xf32>, vector<32x256xf32> -> vector<32x256xf32>
    %100 = vector.broadcast %3 : vector<32x1xf32> to vector<32x256xf32>
    %101 = arith.addf %99, %100 : vector<32x256xf32>
    %cst_46 = arith.constant dense<0.000000e+00> : vector<8x256xf32>
    %102 = tpu.matmul %0, %101, %cst_46 {dimension_numbers = #tpu.dot_dimension_numbers<[1], [0], [0], [1], [0, 0, 1, 1], [], []>} : vector<8x32xf32>, vector<32x256xf32>, vector<8x256xf32> -> vector<8x256xf32>
    %cst_47 = arith.constant 0.176776692 : f32
    %103 = vector.broadcast %cst_47 : f32 to vector<8x256xf32>
    %104 = arith.mulf %102, %103 : vector<8x256xf32>
    %105 = arith.addf %104, %13 : vector<8x256xf32>
    %cst_48 = arith.constant dense<0xFF800000> : vector<8xf32>
    %106 = vector.multi_reduction <maximumf>, %105, %cst_48 [1] : vector<8x256xf32> to vector<8xf32>
    %107 = vector.shape_cast %106 : vector<8xf32> to vector<8x1xf32>
    %108 = vector.broadcast %107 : vector<8x1xf32> to vector<8x256xf32>
    %109 = arith.subf %105, %108 : vector<8x256xf32>
    %110 = math.exp %109 : vector<8x256xf32>
    %cst_49 = arith.constant dense<0.000000e+00> : vector<8xf32>
    %111 = vector.multi_reduction <add>, %110, %cst_49 [1] : vector<8x256xf32> to vector<8xf32>
    %112 = vector.shape_cast %111 : vector<8xf32> to vector<8x1xf32>
    %113 = tpu.reciprocal %112 {approx = true} : vector<8x1xf32> -> vector<8x1xf32>
    %114 = vector.broadcast %113 : vector<8x1xf32> to vector<8x256xf32>
    %115 = arith.mulf %110, %114 : vector<8x256xf32>
    %cst_50 = arith.constant dense<0.000000e+00> : vector<8x32xf32>
    %116 = tpu.matmul %115, %101, %cst_50 {dimension_numbers = #tpu.dot_dimension_numbers<[1], [1], [0], [0], [0, 0, 1, 0], [], []>} : vector<8x256xf32>, vector<32x256xf32>, vector<8x32xf32> -> vector<8x32xf32>
    %117 = arith.addf %0, %116 : vector<8x32xf32>
    %cst_51 = arith.constant dense<0.000000e+00> : vector<8x128xf32>
    %118 = tpu.matmul %117, %9, %cst_51 {dimension_numbers = #tpu.dot_dimension_numbers<[1], [0], [0], [1], [0, 0, 1, 1], [], []>} : vector<8x32xf32>, vector<32x128xf32>, vector<8x128xf32> -> vector<8x128xf32>
    %119 = vector.broadcast %4 : vector<1x128xf32> to vector<8x128xf32>
    %120 = arith.addf %118, %119 : vector<8x128xf32>
    %cst_52 = arith.constant dense<0.000000e+00> : vector<8x32xf32>
    %121 = tpu.matmul %117, %10, %cst_52 {dimension_numbers = #tpu.dot_dimension_numbers<[1], [0], [0], [1], [0, 0, 1, 1], [], []>} : vector<8x32xf32>, vector<32x32xf32>, vector<8x32xf32> -> vector<8x32xf32>
    %122 = vector.broadcast %5 : vector<1x32xf32> to vector<8x32xf32>
    %123 = arith.addf %121, %122 : vector<8x32xf32>
    %cst_53 = arith.constant 0.000000e+00 : f32
    %124 = vector.broadcast %cst_53 : f32 to vector<8x32xf32>
    %125 = arith.maximumf %123, %124 : vector<8x32xf32>
    %cst_54 = arith.constant dense<0.000000e+00> : vector<8x32xf32>
    %126 = tpu.matmul %125, %11, %cst_54 {dimension_numbers = #tpu.dot_dimension_numbers<[1], [0], [0], [1], [0, 0, 1, 1], [], []>} : vector<8x32xf32>, vector<32x32xf32>, vector<8x32xf32> -> vector<8x32xf32>
    %127 = vector.broadcast %6 : vector<1x32xf32> to vector<8x32xf32>
    %128 = arith.addf %126, %127 : vector<8x32xf32>
    %cst_55 = arith.constant 0.000000e+00 : f32
    %129 = vector.broadcast %cst_55 : f32 to vector<8x32xf32>
    %130 = arith.maximumf %128, %129 : vector<8x32xf32>
    %cst_56 = arith.constant dense<0.000000e+00> : vector<8x128xf32>
    %131 = tpu.matmul %130, %12, %cst_56 {dimension_numbers = #tpu.dot_dimension_numbers<[1], [0], [0], [1], [0, 0, 1, 1], [], []>} : vector<8x32xf32>, vector<32x128xf32>, vector<8x128xf32> -> vector<8x128xf32>
    %132 = vector.broadcast %7 : vector<1x128xf32> to vector<8x128xf32>
    %133 = arith.addf %131, %132 : vector<8x128xf32>
    %134 = arith.negf %133 : vector<8x128xf32>
    %135 = math.exp %134 : vector<8x128xf32>
    %cst_57 = arith.constant 1.000000e+00 : f32
    %136 = vector.broadcast %cst_57 : f32 to vector<8x128xf32>
    %137 = arith.addf %136, %135 : vector<8x128xf32>
    %138 = arith.divf %136, %137 : vector<8x128xf32>
    %139 = tpu.concatenate %117, %14 in 1 : vector<8x32xf32>, vector<8x96xf32> -> vector<8x128xf32>
    %c1_58 = arith.constant 1 : index
    %c0_59 = arith.constant 0 : index
    %c0_60 = arith.constant 0 : index
    %140 = vector.load %arg4[%c1_58, %c0_59, %c0_60] : memref<2x8x384xf32, #tpu.memory_space<vmem>>, vector<1x8x128xf32>
    %141 = vector.shape_cast %140 : vector<1x8x128xf32> to vector<8x128xf32>
    %142 = vector.shape_cast %139 : vector<8x128xf32> to vector<1x8x128xf32>
    tpu.vector_store %arg4[%c1_58, %c0_59, %c0_60], %142 {strides = array<i32>} : memref<2x8x384xf32, #tpu.memory_space<vmem>>, vector<1x8x128xf32>,
    %c1_61 = arith.constant 1 : index
    %c0_62 = arith.constant 0 : index
    %c128_63 = arith.constant 128 : index
    %143 = vector.load %arg4[%c1_61, %c0_62, %c128_63] : memref<2x8x384xf32, #tpu.memory_space<vmem>>, vector<1x8x128xf32>
    %144 = vector.shape_cast %143 : vector<1x8x128xf32> to vector<8x128xf32>
    %145 = vector.shape_cast %120 : vector<8x128xf32> to vector<1x8x128xf32>
    tpu.vector_store %arg4[%c1_61, %c0_62, %c128_63], %145 {strides = array<i32>} : memref<2x8x384xf32, #tpu.memory_space<vmem>>, vector<1x8x128xf32>,
    %c1_64 = arith.constant 1 : index
    %c0_65 = arith.constant 0 : index
    %c256_66 = arith.constant 256 : index
    %146 = vector.load %arg4[%c1_64, %c0_65, %c256_66] : memref<2x8x384xf32, #tpu.memory_space<vmem>>, vector<1x8x128xf32>
    %147 = vector.shape_cast %146 : vector<1x8x128xf32> to vector<8x128xf32>
    %148 = vector.shape_cast %138 : vector<8x128xf32> to vector<1x8x128xf32>
    tpu.vector_store %arg4[%c1_64, %c0_65, %c256_66], %148 {strides = array<i32>} : memref<2x8x384xf32, #tpu.memory_space<vmem>>, vector<1x8x128xf32>,
    return
  }
}

</mosaic_0001>

<llo_original>
// kernel: relationformer_forward.1
$region0: #{relationformer_forward.1}
  #allocation0 [shape = 'u32[]', space=smem, size = 0x4, offset = 0x4, fixed_abs, tag = 'smem constant byte address 0x4 - core index']
  #allocation1 [shape = 'u32[144,128]{1,0:T(1,128)}', space=vmem, size = 0x12000, scoped, tag = 'internal scratch']
  %s0 = inlined_call_operand.vmem [shape: f32[2,2,256], index: 0, kind: input, shape index: {}]
  %s1 = inlined_call_operand.vmem [shape: f32[8,256], index: 1, kind: input, shape index: {}]
  %s2 = inlined_call_operand.hbm [shape: f32[32,640], index: 2, kind: input, shape index: {}]
  %s3 = inlined_call_operand.vmem [shape: f32[56,128], index: 3, kind: input, shape index: {}]
  %s4 = inlined_call_operand.vmem [shape: f32[2,8,384], index: 4, kind: output, shape index: {}]
  %s5 = sld [smem:[#allocation0]]
  $region30: #{relationformer_forward.1} parent=0
    _
  %s7 = ssub.s32 1, %s5
  %s8 = scalar_select 0, %s7, %s5
  $region1: #{relationformer_forward.1} parent=0
    #allocation2 [shape = 'u8[81920]{0}', space=vmem, size = 0x14000, scoped, tag = 'input window, operand 2, single buffered']
    #allocation3 [shape = 's32[1]{0}', space=sflag, size = 0x4, scoped, tag = 'scoped memory for relationformer_forward.1']
    %9 = vsyncpa [#allocation3], 0
    // Predicated region
    $region2: #{relationformer_forward.1} parent=1 // pred_check
      _
    $region3: #{relationformer_forward.1} parent=1 // pred_check_branch
      %11 = sbr.rel (0) target = $region5
    $region4: #{relationformer_forward.1} parent=1 // pred_region
      _
    $region5: #{relationformer_forward.1} parent=1 // pred_fallthru
      _
    // Predicated region
    $region6: #{relationformer_forward.1} parent=1 // pred_check
      _
    $region7: #{relationformer_forward.1} parent=1 // pred_check_branch
      %13 = sbr.rel (0) target = $region9
    $region8: #{relationformer_forward.1} parent=1 // pred_region
      _
    $region9: #{relationformer_forward.1} parent=1 // pred_fallthru
      _
    // Predicated region
    $region10: #{relationformer_forward.1} parent=1 // pred_check
      _
    $region11: #{relationformer_forward.1} parent=1 // pred_check_branch
      %15 = sbr.rel (0) target = $region13
    $region12: #{relationformer_forward.1} parent=1 // pred_region
      %s17 = ssub.s32 2560, 2560
      %18 = vsyncadd [#allocation3], %s17
      %s19 = sshll.u32 [#allocation2], 4
      %s20 = int_to_ptr.vmem [resolvable:$true] %s19
      %25 = dma.hbm_to_vmem [thread:$0]  %s2, 2560, %s20, [#allocation3], 640, 640, 40
    $region13: #{relationformer_forward.1} parent=1 // pred_fallthru
      _
    // Predicated region
    $region14: #{relationformer_forward.1} parent=1 // pred_check
      _
    $region15: #{relationformer_forward.1} parent=1 // pred_check_branch
      %27 = sbr.rel (0) target = $region17
    $region16: #{relationformer_forward.1} parent=1 // pred_region
      _
    $region17: #{relationformer_forward.1} parent=1 // pred_fallthru
      _
    // Predicated region
    $region18: #{relationformer_forward.1} parent=1 // pred_check
      _
    $region19: #{relationformer_forward.1} parent=1 // pred_check_branch
      %29 = sbr.rel (0) target = $region21
    $region20: #{relationformer_forward.1} parent=1 // pred_region
      %30 = dma.done [#allocation3], 2560
    $region21: #{relationformer_forward.1} parent=1 // pred_fallthru
      _
    %v31 = vld [vmem:[%s3] sm:$0xff]
    %v32 = vld [vmem:[%s3 + $0x8] sm:$0xff]
    %v33 = vld [vmem:[%s3 + $0x10] sm:$0xff]
    %v34 = vld [vmem:[%s3 + $0x18] sm:$0xff]
    %v35 = vld [vmem:[%s3 + $0x20] sm:$0xff]
    %v36 = vld [vmem:[%s3 + $0x28] sm:$0xff]
    %v37 = vld [vmem:[%s3 + $0x30] sm:$0x1]
    %v38 = vld [vmem:[%s3 + $0x31] sm:$0x1]
    %v39 = vld [vmem:[%s3 + $0x32] sm:$0x1]
    %v40 = vld [vmem:[%s3 + $0x33] sm:$0x1]
    %v41 = vld [vmem:[#allocation2] sm:$0xff]
    %v42 = vld [vmem:[#allocation2 + $0x28] sm:$0xff]
    %v43 = vld [vmem:[#allocation2 + $0x50] sm:$0xff]
    %v44 = vld [vmem:[#allocation2 + $0x78] sm:$0xff]
    %v45 = vld [vmem:[#allocation2 + $0x8] sm:$0xff]
    %v46 = vld [vmem:[#allocation2 + $0x30] sm:$0xff]
    %v47 = vld [vmem:[#allocation2 + $0x58] sm:$0xff]
    %v48 = vld [vmem:[#allocation2 + $0x80] sm:$0xff]
    %v49 = vld [vmem:[#allocation2 + $0x10] sm:$0xff]
    %v50 = vld [vmem:[#allocation2 + $0x38] sm:$0xff]
    %v51 = vld [vmem:[#allocation2 + $0x60] sm:$0xff]
    %v52 = vld [vmem:[#allocation2 + $0x88] sm:$0xff]
    %v53 = vld [vmem:[#allocation2 + $0x18] sm:$0xff]
    %v54 = vld [vmem:[#allocation2 + $0x40] sm:$0xff]
    %v55 = vld [vmem:[#allocation2 + $0x68] sm:$0xff]
    %v56 = vld [vmem:[#allocation2 + $0x90] sm:$0xff]
    %v57 = vld [vmem:[#allocation2 + $0x20] sm:$0xff]
    %v58 = vld [vmem:[#allocation2 + $0x48] sm:$0xff]
    %v59 = vld [vmem:[#allocation2 + $0x70] sm:$0xff]
    %v60 = vld [vmem:[#allocation2 + $0x98] sm:$0xff]
    %v61 = vld [vmem:[%s1] sm:$0xff]
    %v62 = vld [vmem:[%s1 + $0x8] sm:$0xff]
    %v63 = vld [vmem:[%s0] sm:$0xf]
    %65 = vset.pattern.permute.xlu0 0
    %66 = vperm.xlu0 %65, %v32
    %v67 = vpop.permute.xlu0 %66
    %v70 = vlaneseq
    %v71 = vshrl.u32 %v70, 7
    %v72 = vsub.s32 0, %v71
    %v73 = vrot.slane %v63, %v72
    %v74 = vlaneseq
    %v75 = vshrl.u32 %v74, 7
    %v76 = vsub.s32 2, %v75
    %v77 = vrot.slane %v63, %v76
    %v80 = vlaneseq
    %v81 = vshrl.u32 %v80, 7
    %v82 = vsub.s32 0, %v81
    %v83 = vrot.slane %v73, %v82
    %v84 = vlaneseq
    %v85 = vshrl.u32 %v84, 7
    %v86 = vsub.s32 0, %v85
    %v87 = vrot.slane %v77, %v86
    %v88 = vmul.f32 %v67, %v83
    %v89 = vmul.f32 %v67, %v87
    %90 = vset.pattern.permute.xlu0 2
    %91 = vperm.xlu0 %90, %v32
    %v92 = vpop.permute.xlu0 %91
    %v94 = vadd.f32 %v92, %v88
    %v95 = vadd.f32 %v92, %v89
    %96 = vset.pattern.permute.xlu0 1
    %97 = vperm.xlu0 %96, %v32
    %v98 = vpop.permute.xlu0 %97
    %v100 = vlaneseq
    %v101 = vshrl.u32 %v100, 7
    %v102 = vsub.s32 1, %v101
    %v103 = vrot.slane %v63, %v102
    %v104 = vlaneseq
    %v105 = vshrl.u32 %v104, 7
    %v106 = vsub.s32 3, %v105
    %v107 = vrot.slane %v63, %v106
    %v110 = vlaneseq
    %v111 = vshrl.u32 %v110, 7
    %v112 = vsub.s32 1, %v111
    %v113 = vrot.slane %v103, %v112
    %v114 = vlaneseq
    %v115 = vshrl.u32 %v114, 7
    %v116 = vsub.s32 1, %v115
    %v117 = vrot.slane %v107, %v116
    %v118 = vmul.f32 %v98, %v113
    %v119 = vmul.f32 %v98, %v117
    %v120 = vadd.f32 %v94, %v118
    %v121 = vadd.f32 %v95, %v119
    %v122 = vmax.f32 %v120, 0.0
    %v123 = vmax.f32 %v121, 0.0
    %125 = vset.pattern.permute.xlu0 0
    %126 = vperm.xlu0 %125, %v33
    %v127 = vpop.permute.xlu0 %126
    %130 = vset.pattern.permute.xlu0 0
    %131 = vperm.xlu0 %130, %v34
    %v132 = vpop.permute.xlu0 %131
    %135 = vset.pattern.permute.xlu0 0
    %136 = vperm.xlu0 %135, %v35
    %v137 = vpop.permute.xlu0 %136
    %140 = vset.pattern.permute.xlu0 0
    %141 = vperm.xlu0 %140, %v36
    %v142 = vpop.permute.xlu0 %141
    %vm144 = vcmask 64512
    %v146 = vsel %vm144, %v41, 0
    %v149 = vsel %vm144, %v42, 0
    %v152 = vsel %vm144, %v43, 0
    %v155 = vsel %vm144, %v44, 0
    %157 = vmatprep.subr.mxu0 %v123
    %158 = vmatpush1.msra.mxu0 %v122
    %159 = vmatprep.subr.mxu0 0.0
    %160 = vmatpush1.msra.mxu0 0.0
    %161 = vmatprep.subr.mxu0 0.0
    %162 = vmatpush1.msra.mxu0 0.0
    %163 = vmatprep.subr.mxu0 0.0
    %164 = vmatpush1.msra.mxu0 0.0
    %165 = vmatprep.subr.mxu0 0.0
    %166 = vmatpush1.msra.mxu0 0.0
    %167 = vmatprep.subr.mxu0 0.0
    %168 = vmatpush1.msra.mxu0 0.0
    %169 = vmatprep.subr.mxu0 0.0
    %170 = vmatpush1.msra.mxu0 0.0
    %171 = vmatprep.subr.mxu0 0.0
    %172 = vmatpush1.msra.mxu0 0.0
    %173 = vmatprep.subr.mxu0 0.0
    %174 = vmatpush1.msra.mxu0 0.0
    %175 = vmatprep.subr.mxu0 0.0
    %176 = vmatpush1.msra.mxu0 0.0
    %177 = vmatprep.subr.mxu0 0.0
    %178 = vmatpush1.msra.mxu0 0.0
    %179 = vmatprep.subr.mxu0 0.0
    %180 = vmatpush1.msra.mxu0 0.0
    %181 = vmatprep.subr.mxu0 0.0
    %182 = vmatpush1.msra.mxu0 0.0
    %183 = vmatprep.subr.mxu0 0.0
    %184 = vmatpush1.msra.mxu0 0.0
    %185 = vmatprep.subr.mxu0 0.0
    %186 = vmatpush1.msra.mxu0 0.0
    %187 = vmatprep.subr.mxu0 0.0
    %188 = vmatpush1.msra.mxu0 0.0
    %189 = vmatprep.subr.mxu0 0.0
    %190 = vmatpush1.msra.mxu0 0.0
    %191 = vmatprep.subr.mxu0 0.0
    %192 = vmatpush1.msra.mxu0 0.0
    %193 = vmatprep.subr.mxu0 0.0
    %194 = vmatpush1.msra.mxu0 0.0
    %195 = vmatprep.subr.mxu0 0.0
    %196 = vmatpush1.msra.mxu0 0.0
    %197 = vmatprep.subr.mxu0 0.0
    %198 = vmatpush1.msra.mxu0 0.0
    %199 = vmatprep.subr.mxu0 0.0
    %200 = vmatpush1.msra.mxu0 0.0
    %201 = vmatprep.subr.mxu0 0.0
    %202 = vmatpush1.msra.mxu0 0.0
    %203 = vmatprep.subr.mxu0 0.0
    %204 = vmatpush1.msra.mxu0 0.0
    %205 = vmatprep.subr.mxu0 0.0
    %206 = vmatpush1.msra.mxu0 0.0
    %207 = vmatprep.subr.mxu0 0.0
    %208 = vmatpush1.msra.mxu0 0.0
    %209 = vmatprep.subr.mxu0 0.0
    %210 = vmatpush1.msra.mxu0 0.0
    %211 = vmatprep.subr.mxu0 0.0
    %212 = vmatpush1.msra.mxu0 0.0
    %213 = vmatprep.subr.mxu0 0.0
    %214 = vmatpush1.msra.mxu0 0.0
    %215 = vmatprep.subr.mxu0 0.0
    %216 = vmatpush1.msra.mxu0 0.0
    %217 = vmatprep.subr.mxu0 0.0
    %218 = vmatpush1.msra.mxu0 0.0
    %219 = vmatprep.subr.mxu0 0.0
    %220 = vmatpush1.msra.mxu0 0.0
    %221 = vmatprep.mubr.f32.mxu0 0.0
    %222 = vmatmul.mubr.f32.gmra.mrb[0].mxu0 %v146
    %v223 = vpop.f32.mrb[0].mxu0
    %v224 = vadd.f32 %v127, %v223
    %v225 = vpop.f32.mrb[0].mxu0
    %v226 = vadd.f32 %v127, %v225
    %227 = vmatprep.mubr.f32.mxu0 0.0
    %228 = vmatmul.mubr.f32.gmra.mrb[0].mxu0 %v149
    %v229 = vpop.f32.mrb[0].mxu0
    %v230 = vadd.f32 %v132, %v229
    %v231 = vpop.f32.mrb[0].mxu0
    %v232 = vadd.f32 %v132, %v231
    %233 = vmatprep.mubr.f32.mxu0 0.0
    %234 = vmatmul.mubr.f32.gmra.mrb[0].mxu0 %v152
    %v235 = vpop.f32.mrb[0].mxu0
    %v236 = vadd.f32 %v137, %v235
    %v237 = vpop.f32.mrb[0].mxu0
    %v238 = vadd.f32 %v137, %v237
    %239 = vmatprep.mubr.f32.mxu0 0.0
    %240 = vmatmul.mubr.f32.gmra.mrb[0].mxu0 %v155
    %v241 = vpop.f32.mrb[0].mxu0
    %v242 = vadd.f32 %v142, %v241
    %v243 = vpop.f32.mrb[0].mxu0
    %v244 = vadd.f32 %v142, %v243
    %245 = vdwg.mxu0
    %vm246 = vcmask 261120
    %v248 = vsel %vm246, %v31, 0
    %250 = vmatprep.subr.mxu0 %v226
    %251 = vmatpush1.msra.mxu0 %v224
    %252 = vmatprep.subr.mxu0 %v232
    %253 = vmatpush1.msra.mxu0 %v230
    %254 = vmatprep.subr.mxu0 %v238
    %255 = vmatpush1.msra.mxu0 %v236
    %256 = vmatprep.subr.mxu0 %v244
    %257 = vmatpush1.msra.mxu0 %v242
    %258 = vmatprep.subr.mxu0 0.0
    %259 = vmatpush1.msra.mxu0 0.0
    %260 = vmatprep.subr.mxu0 0.0
    %261 = vmatpush1.msra.mxu0 0.0
    %262 = vmatprep.subr.mxu0 0.0
    %263 = vmatpush1.msra.mxu0 0.0
    %264 = vmatprep.subr.mxu0 0.0
    %265 = vmatpush1.msra.mxu0 0.0
    %266 = vmatprep.subr.mxu0 0.0
    %267 = vmatpush1.msra.mxu0 0.0
    %268 = vmatprep.subr.mxu0 0.0
    %269 = vmatpush1.msra.mxu0 0.0
    %270 = vmatprep.subr.mxu0 0.0
    %271 = vmatpush1.msra.mxu0 0.0
    %272 = vmatprep.subr.mxu0 0.0
    %273 = vmatpush1.msra.mxu0 0.0
    %274 = vmatprep.subr.mxu0 0.0
    %275 = vmatpush1.msra.mxu0 0.0
    %276 = vmatprep.subr.mxu0 0.0
    %277 = vmatpush1.msra.mxu0 0.0
    %278 = vmatprep.subr.mxu0 0.0
    %279 = vmatpush1.msra.mxu0 0.0
    %280 = vmatprep.subr.mxu0 0.0
    %281 = vmatpush1.msra.mxu0 0.0
    %282 = vmatprep.subr.mxu0 0.0
    %283 = vmatpush1.msra.mxu0 0.0
    %284 = vmatprep.subr.mxu0 0.0
    %285 = vmatpush1.msra.mxu0 0.0
    %286 = vmatprep.subr.mxu0 0.0
    %287 = vmatpush1.msra.mxu0 0.0
    %288 = vmatprep.subr.mxu0 0.0
    %289 = vmatpush1.msra.mxu0 0.0
    %290 = vmatprep.subr.mxu0 0.0
    %291 = vmatpush1.msra.mxu0 0.0
    %292 = vmatprep.subr.mxu0 0.0
    %293 = vmatpush1.msra.mxu0 0.0
    %294 = vmatprep.subr.mxu0 0.0
    %295 = vmatpush1.msra.mxu0 0.0
    %296 = vmatprep.subr.mxu0 0.0
    %297 = vmatpush1.msra.mxu0 0.0
    %298 = vmatprep.subr.mxu0 0.0
    %299 = vmatpush1.msra.mxu0 0.0
    %300 = vmatprep.subr.mxu0 0.0
    %301 = vmatpush1.msra.mxu0 0.0
    %302 = vmatprep.subr.mxu0 0.0
    %303 = vmatpush1.msra.mxu0 0.0
    %304 = vmatprep.subr.mxu0 0.0
    %305 = vmatpush1.msra.mxu0 0.0
    %306 = vmatprep.subr.mxu0 0.0
    %307 = vmatpush1.msra.mxu0 0.0
    %308 = vmatprep.subr.mxu0 0.0
    %309 = vmatpush1.msra.mxu0 0.0
    %310 = vmatprep.subr.mxu0 0.0
    %311 = vmatpush1.msra.mxu0 0.0
    %312 = vmatprep.subr.mxu0 0.0
    %313 = vmatpush1.msra.mxu0 0.0
    %314 = vmatprep.mubr.f32.mxu0 0.0
    %315 = vmatmul.mubr.f32.gmra.mrb[0].mxu0 %v248
    %v316 = vpop.f32.mrb[0].mxu0
    %v317 = vadd.f32 0.0, %v316
    %v318 = vpop.f32.mrb[0].mxu0
    %v319 = vadd.f32 0.0, %v318
    %320 = vdwg.mxu0
    %v321 = vmul.f32 %v317, 0.17677669
    %v322 = vmul.f32 %v319, 0.17677669
    %v323 = vadd.f32 %v321, %v61
    %v324 = vadd.f32 %v322, %v62
    %v325 = vmax.f32 %v323, %v324
    %326 = vmax.xlane.f32.xlu0 %v325
    %v327 = vpop.xlane.xlu0 %326
    %v328 = vsub.f32 %v323, %v327
    %v329 = vsub.f32 %v324, %v327
    %v330 = vmul.f32 %v328, 1.442695
    %v331 = vpow.pop %v330
    %v332 = vmul.f32 %v329, 1.442695
    %v333 = vpow.pop %v332
    %v334 = vadd.f32 %v331, %v333
    %335 = vadd.xlane.f32.xlu0 %v334
    %v336 = vpop.xlane.xlu0 %335
    %v337 = vrcp.pop %v336
    %v338 = vmul.f32 %v331, %v337
    %v339 = vmul.f32 %v333, %v337
    %340 = vmatprep.subr.mxu0 %v226
    %341 = vmatpush1.xpose.msra.mxu0 %v224
    %342 = vmatprep.subr.mxu0 %v232
    %343 = vmatpush1.xpose.msra.mxu0 %v230
    %344 = vmatprep.subr.mxu0 %v238
    %345 = vmatpush1.xpose.msra.mxu0 %v236
    %346 = vmatprep.subr.mxu0 %v244
    %347 = vmatpush1.xpose.msra.mxu0 %v242
    %348 = vmatprep.subr.mxu0 0.0
    %349 = vmatpush1.xpose.msra.mxu0 0.0
    %350 = vmatprep.subr.mxu0 0.0
    %351 = vmatpush1.xpose.msra.mxu0 0.0
    %352 = vmatprep.subr.mxu0 0.0
    %353 = vmatpush1.xpose.msra.mxu0 0.0
    %354 = vmatprep.subr.mxu0 0.0
    %355 = vmatpush1.xpose.msra.mxu0 0.0
    %356 = vmatprep.subr.mxu0 0.0
    %357 = vmatpush1.xpose.msra.mxu0 0.0
    %358 = vmatprep.subr.mxu0 0.0
    %359 = vmatpush1.xpose.msra.mxu0 0.0
    %360 = vmatprep.subr.mxu0 0.0
    %361 = vmatpush1.xpose.msra.mxu0 0.0
    %362 = vmatprep.subr.mxu0 0.0
    %363 = vmatpush1.xpose.msra.mxu0 0.0
    %364 = vmatprep.subr.mxu0 0.0
    %365 = vmatpush1.xpose.msra.mxu0 0.0
    %366 = vmatprep.subr.mxu0 0.0
    %367 = vmatpush1.xpose.msra.mxu0 0.0
    %368 = vmatprep.subr.mxu0 0.0
    %369 = vmatpush1.xpose.msra.mxu0 0.0
    %370 = vmatprep.subr.mxu0 0.0
    %371 = vmatpush1.xpose.msra.mxu0 0.0
    %372 = vmatprep.subr.mxu0 0.0
    %373 = vmatpush1.xpose.msra.mxu0 0.0
    %374 = vmatprep.subr.mxu0 0.0
    %375 = vmatpush1.xpose.msra.mxu0 0.0
    %376 = vmatprep.subr.mxu0 0.0
    %377 = vmatpush1.xpose.msra.mxu0 0.0
    %378 = vmatprep.subr.mxu0 0.0
    %379 = vmatpush1.xpose.msra.mxu0 0.0
    %380 = vmatprep.subr.mxu0 0.0
    %381 = vmatpush1.xpose.msra.mxu0 0.0
    %382 = vmatprep.subr.mxu0 0.0
    %383 = vmatpush1.xpose.msra.mxu0 0.0
    %384 = vmatprep.subr.mxu0 0.0
    %385 = vmatpush1.xpose.msra.mxu0 0.0
    %386 = vmatprep.subr.mxu0 0.0
    %387 = vmatpush1.xpose.msra.mxu0 0.0
    %388 = vmatprep.subr.mxu0 0.0
    %389 = vmatpush1.xpose.msra.mxu0 0.0
    %390 = vmatprep.subr.mxu0 0.0
    %391 = vmatpush1.xpose.msra.mxu0 0.0
    %392 = vmatprep.subr.mxu0 0.0
    %393 = vmatpush1.xpose.msra.mxu0 0.0
    %394 = vmatprep.subr.mxu0 0.0
    %395 = vmatpush1.xpose.msra.mxu0 0.0
    %396 = vmatprep.subr.mxu0 0.0
    %397 = vmatpush1.xpose.msra.mxu0 0.0
    %398 = vmatprep.subr.mxu0 0.0
    %399 = vmatpush1.xpose.msra.mxu0 0.0
    %400 = vmatprep.subr.mxu0 0.0
    %401 = vmatpush1.xpose.msra.mxu0 0.0
    %402 = vmatprep.subr.mxu0 0.0
    %403 = vmatpush1.xpose.msra.mxu0 0.0
    %404 = vmatprep.mubr.f32.mxu0 %v339
    %405 = vmatmul.mubr.f32.gmra.mrb[0].mxu0 %v338
    %v406 = vpop.f32.mrb[0].mxu0
    %v407 = vadd.f32 0.0, %v406
    %v408 = vpop.f32.mrb[0].mxu0
    %409 = vdwg.mxu0
    %v410 = vadd.f32 %v31, %v407
    %v411 = vlaneseq
    %v412 = vshrl.u32 %v411, 7
    %v413 = vsub.s32 0, %v412
    %v414 = vrot.slane %v37, %v413
    %v416 = vsel %vm246, %v410, 0
    %418 = vmatprep.subr.mxu0 0.0
    %419 = vmatpush1.msra.mxu0 %v45
    %420 = vmatprep.subr.mxu0 0.0
    %421 = vmatpush1.msra.mxu0 %v46
    %422 = vmatprep.subr.mxu0 0.0
    %423 = vmatpush1.msra.mxu0 %v47
    %424 = vmatprep.subr.mxu0 0.0
    %425 = vmatpush1.msra.mxu0 %v48
    %426 = vmatprep.subr.mxu0 0.0
    %427 = vmatpush1.msra.mxu0 0.0
    %428 = vmatprep.subr.mxu0 0.0
    %429 = vmatpush1.msra.mxu0 0.0
    %430 = vmatprep.subr.mxu0 0.0
    %431 = vmatpush1.msra.mxu0 0.0
    %432 = vmatprep.subr.mxu0 0.0
    %433 = vmatpush1.msra.mxu0 0.0
    %434 = vmatprep.subr.mxu0 0.0
    %435 = vmatpush1.msra.mxu0 0.0
    %436 = vmatprep.subr.mxu0 0.0
    %437 = vmatpush1.msra.mxu0 0.0
    %438 = vmatprep.subr.mxu0 0.0
    %439 = vmatpush1.msra.mxu0 0.0
    %440 = vmatprep.subr.mxu0 0.0
    %441 = vmatpush1.msra.mxu0 0.0
    %442 = vmatprep.subr.mxu0 0.0
    %443 = vmatpush1.msra.mxu0 0.0
    %444 = vmatprep.subr.mxu0 0.0
    %445 = vmatpush1.msra.mxu0 0.0
    %446 = vmatprep.subr.mxu0 0.0
    %447 = vmatpush1.msra.mxu0 0.0
    %448 = vmatprep.subr.mxu0 0.0
    %449 = vmatpush1.msra.mxu0 0.0
    %450 = vmatprep.subr.mxu0 0.0
    %451 = vmatpush1.msra.mxu0 0.0
    %452 = vmatprep.subr.mxu0 0.0
    %453 = vmatpush1.msra.mxu0 0.0
    %454 = vmatprep.subr.mxu0 0.0
    %455 = vmatpush1.msra.mxu0 0.0
    %456 = vmatprep.subr.mxu0 0.0
    %457 = vmatpush1.msra.mxu0 0.0
    %458 = vmatprep.subr.mxu0 0.0
    %459 = vmatpush1.msra.mxu0 0.0
    %460 = vmatprep.subr.mxu0 0.0
    %461 = vmatpush1.msra.mxu0 0.0
    %462 = vmatprep.subr.mxu0 0.0
    %463 = vmatpush1.msra.mxu0 0.0
    %464 = vmatprep.subr.mxu0 0.0
    %465 = vmatpush1.msra.mxu0 0.0
    %466 = vmatprep.subr.mxu0 0.0
    %467 = vmatpush1.msra.mxu0 0.0
    %468 = vmatprep.subr.mxu0 0.0
    %469 = vmatpush1.msra.mxu0 0.0
    %470 = vmatprep.subr.mxu0 0.0
    %471 = vmatpush1.msra.mxu0 0.0
    %472 = vmatprep.subr.mxu0 0.0
    %473 = vmatpush1.msra.mxu0 0.0
    %474 = vmatprep.subr.mxu0 0.0
    %475 = vmatpush1.msra.mxu0 0.0
    %476 = vmatprep.subr.mxu0 0.0
    %477 = vmatpush1.msra.mxu0 0.0
    %478 = vmatprep.subr.mxu0 0.0
    %479 = vmatpush1.msra.mxu0 0.0
    %480 = vmatprep.subr.mxu0 0.0
    %481 = vmatpush1.msra.mxu0 0.0
    %482 = vmatprep.mubr.f32.mxu0 0.0
    %483 = vmatmul.mubr.f32.gmra.mrb[0].mxu0 %v416
    %v484 = vpop.f32.mrb[0].mxu0
    %v485 = vadd.f32 %v414, %v484
    %v486 = vpop.f32.mrb[0].mxu0
    %487 = vdwg.mxu0
    %v488 = vlaneseq
    %v489 = vshrl.u32 %v488, 7
    %v490 = vsub.s32 0, %v489
    %v491 = vrot.slane %v38, %v490
    %492 = vmatprep.subr.mxu0 0.0
    %493 = vmatpush1.msra.mxu0 %v49
    %494 = vmatprep.subr.mxu0 0.0
    %495 = vmatpush1.msra.mxu0 %v50
    %496 = vmatprep.subr.mxu0 0.0
    %497 = vmatpush1.msra.mxu0 %v51
    %498 = vmatprep.subr.mxu0 0.0
    %499 = vmatpush1.msra.mxu0 %v52
    %500 = vmatprep.subr.mxu0 0.0
    %501 = vmatpush1.msra.mxu0 0.0
    %502 = vmatprep.subr.mxu0 0.0
    %503 = vmatpush1.msra.mxu0 0.0
    %504 = vmatprep.subr.mxu0 0.0
    %505 = vmatpush1.msra.mxu0 0.0
    %506 = vmatprep.subr.mxu0 0.0
    %507 = vmatpush1.msra.mxu0 0.0
    %508 = vmatprep.subr.mxu0 0.0
    %509 = vmatpush1.msra.mxu0 0.0
    %510 = vmatprep.subr.mxu0 0.0
    %511 = vmatpush1.msra.mxu0 0.0
    %512 = vmatprep.subr.mxu0 0.0
    %513 = vmatpush1.msra.mxu0 0.0
    %514 = vmatprep.subr.mxu0 0.0
    %515 = vmatpush1.msra.mxu0 0.0
    %516 = vmatprep.subr.mxu0 0.0
    %517 = vmatpush1.msra.mxu0 0.0
    %518 = vmatprep.subr.mxu0 0.0
    %519 = vmatpush1.msra.mxu0 0.0
    %520 = vmatprep.subr.mxu0 0.0
    %521 = vmatpush1.msra.mxu0 0.0
    %522 = vmatprep.subr.mxu0 0.0
    %523 = vmatpush1.msra.mxu0 0.0
    %524 = vmatprep.subr.mxu0 0.0
    %525 = vmatpush1.msra.mxu0 0.0
    %526 = vmatprep.subr.mxu0 0.0
    %527 = vmatpush1.msra.mxu0 0.0
    %528 = vmatprep.subr.mxu0 0.0
    %529 = vmatpush1.msra.mxu0 0.0
    %530 = vmatprep.subr.mxu0 0.0
    %531 = vmatpush1.msra.mxu0 0.0
    %532 = vmatprep.subr.mxu0 0.0
    %533 = vmatpush1.msra.mxu0 0.0
    %534 = vmatprep.subr.mxu0 0.0
    %535 = vmatpush1.msra.mxu0 0.0
    %536 = vmatprep.subr.mxu0 0.0
    %537 = vmatpush1.msra.mxu0 0.0
    %538 = vmatprep.subr.mxu0 0.0
    %539 = vmatpush1.msra.mxu0 0.0
    %540 = vmatprep.subr.mxu0 0.0
    %541 = vmatpush1.msra.mxu0 0.0
    %542 = vmatprep.subr.mxu0 0.0
    %543 = vmatpush1.msra.mxu0 0.0
    %544 = vmatprep.subr.mxu0 0.0
    %545 = vmatpush1.msra.mxu0 0.0
    %546 = vmatprep.subr.mxu0 0.0
    %547 = vmatpush1.msra.mxu0 0.0
    %548 = vmatprep.subr.mxu0 0.0
    %549 = vmatpush1.msra.mxu0 0.0
    %550 = vmatprep.subr.mxu0 0.0
    %551 = vmatpush1.msra.mxu0 0.0
    %552 = vmatprep.subr.mxu0 0.0
    %553 = vmatpush1.msra.mxu0 0.0
    %554 = vmatprep.subr.mxu0 0.0
    %555 = vmatpush1.msra.mxu0 0.0
    %556 = vmatprep.mubr.f32.mxu0 0.0
    %557 = vmatmul.mubr.f32.gmra.mrb[0].mxu0 %v416
    %v558 = vpop.f32.mrb[0].mxu0
    %v559 = vadd.f32 %v491, %v558
    %v560 = vpop.f32.mrb[0].mxu0
    %561 = vdwg.mxu0
    %v562 = vmax.f32 %v559, 0.0
    %v563 = vlaneseq
    %v564 = vshrl.u32 %v563, 7
    %v565 = vsub.s32 0, %v564
    %v566 = vrot.slane %v39, %v565
    %v568 = vsel %vm246, %v562, 0
    %570 = vmatprep.subr.mxu0 0.0
    %571 = vmatpush1.msra.mxu0 %v53
    %572 = vmatprep.subr.mxu0 0.0
    %573 = vmatpush1.msra.mxu0 %v54
    %574 = vmatprep.subr.mxu0 0.0
    %575 = vmatpush1.msra.mxu0 %v55
    %576 = vmatprep.subr.mxu0 0.0
    %577 = vmatpush1.msra.mxu0 %v56
    %578 = vmatprep.subr.mxu0 0.0
    %579 = vmatpush1.msra.mxu0 0.0
    %580 = vmatprep.subr.mxu0 0.0
    %581 = vmatpush1.msra.mxu0 0.0
    %582 = vmatprep.subr.mxu0 0.0
    %583 = vmatpush1.msra.mxu0 0.0
    %584 = vmatprep.subr.mxu0 0.0
    %585 = vmatpush1.msra.mxu0 0.0
    %586 = vmatprep.subr.mxu0 0.0
    %587 = vmatpush1.msra.mxu0 0.0
    %588 = vmatprep.subr.mxu0 0.0
    %589 = vmatpush1.msra.mxu0 0.0
    %590 = vmatprep.subr.mxu0 0.0
    %591 = vmatpush1.msra.mxu0 0.0
    %592 = vmatprep.subr.mxu0 0.0
    %593 = vmatpush1.msra.mxu0 0.0
    %594 = vmatprep.subr.mxu0 0.0
    %595 = vmatpush1.msra.mxu0 0.0
    %596 = vmatprep.subr.mxu0 0.0
    %597 = vmatpush1.msra.mxu0 0.0
    %598 = vmatprep.subr.mxu0 0.0
    %599 = vmatpush1.msra.mxu0 0.0
    %600 = vmatprep.subr.mxu0 0.0
    %601 = vmatpush1.msra.mxu0 0.0
    %602 = vmatprep.subr.mxu0 0.0
    %603 = vmatpush1.msra.mxu0 0.0
    %604 = vmatprep.subr.mxu0 0.0
    %605 = vmatpush1.msra.mxu0 0.0
    %606 = vmatprep.subr.mxu0 0.0
    %607 = vmatpush1.msra.mxu0 0.0
    %608 = vmatprep.subr.mxu0 0.0
    %609 = vmatpush1.msra.mxu0 0.0
    %610 = vmatprep.subr.mxu0 0.0
    %611 = vmatpush1.msra.mxu0 0.0
    %612 = vmatprep.subr.mxu0 0.0
    %613 = vmatpush1.msra.mxu0 0.0
    %614 = vmatprep.subr.mxu0 0.0
    %615 = vmatpush1.msra.mxu0 0.0
    %616 = vmatprep.subr.mxu0 0.0
    %617 = vmatpush1.msra.mxu0 0.0
    %618 = vmatprep.subr.mxu0 0.0
    %619 = vmatpush1.msra.mxu0 0.0
    %620 = vmatprep.subr.mxu0 0.0
    %621 = vmatpush1.msra.mxu0 0.0
    %622 = vmatprep.subr.mxu0 0.0
    %623 = vmatpush1.msra.mxu0 0.0
    %624 = vmatprep.subr.mxu0 0.0
    %625 = vmatpush1.msra.mxu0 0.0
    %626 = vmatprep.subr.mxu0 0.0
    %627 = vmatpush1.msra.mxu0 0.0
    %628 = vmatprep.subr.mxu0 0.0
    %629 = vmatpush1.msra.mxu0 0.0
    %630 = vmatprep.subr.mxu0 0.0
    %631 = vmatpush1.msra.mxu0 0.0
    %632 = vmatprep.subr.mxu0 0.0
    %633 = vmatpush1.msra.mxu0 0.0
    %634 = vmatprep.mubr.f32.mxu0 0.0
    %635 = vmatmul.mubr.f32.gmra.mrb[0].mxu0 %v568
    %v636 = vpop.f32.mrb[0].mxu0
    %v637 = vadd.f32 %v566, %v636
    %v638 = vpop.f32.mrb[0].mxu0
    %639 = vdwg.mxu0
    %v640 = vmax.f32 %v637, 0.0
    %v641 = vlaneseq
    %v642 = vshrl.u32 %v641, 7
    %v643 = vsub.s32 0, %v642
    %v644 = vrot.slane %v40, %v643
    %v646 = vsel %vm246, %v640, 0
    %648 = vmatprep.subr.mxu0 0.0
    %649 = vmatpush1.msra.mxu0 %v57
    %650 = vmatprep.subr.mxu0 0.0
    %651 = vmatpush1.msra.mxu0 %v58
    %652 = vmatprep.subr.mxu0 0.0
    %653 = vmatpush1.msra.mxu0 %v59
    %654 = vmatprep.subr.mxu0 0.0
    %655 = vmatpush1.msra.mxu0 %v60
    %656 = vmatprep.subr.mxu0 0.0
    %657 = vmatpush1.msra.mxu0 0.0
    %658 = vmatprep.subr.mxu0 0.0
    %659 = vmatpush1.msra.mxu0 0.0
    %660 = vmatprep.subr.mxu0 0.0
    %661 = vmatpush1.msra.mxu0 0.0
    %662 = vmatprep.subr.mxu0 0.0
    %663 = vmatpush1.msra.mxu0 0.0
    %664 = vmatprep.subr.mxu0 0.0
    %665 = vmatpush1.msra.mxu0 0.0
    %666 = vmatprep.subr.mxu0 0.0
    %667 = vmatpush1.msra.mxu0 0.0
    %668 = vmatprep.subr.mxu0 0.0
    %669 = vmatpush1.msra.mxu0 0.0
    %670 = vmatprep.subr.mxu0 0.0
    %671 = vmatpush1.msra.mxu0 0.0
    %672 = vmatprep.subr.mxu0 0.0
    %673 = vmatpush1.msra.mxu0 0.0
    %674 = vmatprep.subr.mxu0 0.0
    %675 = vmatpush1.msra.mxu0 0.0
    %676 = vmatprep.subr.mxu0 0.0
    %677 = vmatpush1.msra.mxu0 0.0
    %678 = vmatprep.subr.mxu0 0.0
    %679 = vmatpush1.msra.mxu0 0.0
    %680 = vmatprep.subr.mxu0 0.0
    %681 = vmatpush1.msra.mxu0 0.0
    %682 = vmatprep.subr.mxu0 0.0
    %683 = vmatpush1.msra.mxu0 0.0
    %684 = vmatprep.subr.mxu0 0.0
    %685 = vmatpush1.msra.mxu0 0.0
    %686 = vmatprep.subr.mxu0 0.0
    %687 = vmatpush1.msra.mxu0 0.0
    %688 = vmatprep.subr.mxu0 0.0
    %689 = vmatpush1.msra.mxu0 0.0
    %690 = vmatprep.subr.mxu0 0.0
    %691 = vmatpush1.msra.mxu0 0.0
    %692 = vmatprep.subr.mxu0 0.0
    %693 = vmatpush1.msra.mxu0 0.0
    %694 = vmatprep.subr.mxu0 0.0
    %695 = vmatpush1.msra.mxu0 0.0
    %696 = vmatprep.subr.mxu0 0.0
    %697 = vmatpush1.msra.mxu0 0.0
    %698 = vmatprep.subr.mxu0 0.0
    %699 = vmatpush1.msra.mxu0 0.0
    %700 = vmatprep.subr.mxu0 0.0
    %701 = vmatpush1.msra.mxu0 0.0
    %702 = vmatprep.subr.mxu0 0.0
    %703 = vmatpush1.msra.mxu0 0.0
    %704 = vmatprep.subr.mxu0 0.0
    %705 = vmatpush1.msra.mxu0 0.0
    %706 = vmatprep.subr.mxu0 0.0
    %707 = vmatpush1.msra.mxu0 0.0
    %708 = vmatprep.subr.mxu0 0.0
    %709 = vmatpush1.msra.mxu0 0.0
    %710 = vmatprep.subr.mxu0 0.0
    %711 = vmatpush1.msra.mxu0 0.0
    %712 = vmatprep.mubr.f32.mxu0 0.0
    %713 = vmatmul.mubr.f32.gmra.mrb[0].mxu0 %v646
    %v714 = vpop.f32.mrb[0].mxu0
    %v715 = vadd.f32 %v644, %v714
    %v716 = vpop.f32.mrb[0].mxu0
    %717 = vdwg.mxu0
    %v718 = vxor.u32 %v715, 2147483648
    %v719 = vmul.f32 %v718, 1.442695
    %v720 = vpow.pop %v719
    %v721 = vadd.f32 %v720, 1.0
    %v722 = vrcp.pop %v721
    %v723 = vmul.f32 1.0, %v722
    %v724 = vsel %vm246, %v410, 0.0
    %725 = vst [vmem:[%s4] sm:$0xff] %v724
    %726 = vst [vmem:[%s4 + $0x8] sm:$0xff] %v485
    %727 = vst [vmem:[%s4 + $0x10] sm:$0xff] %v723
    %s728 = scalar_lea.vmem %s0, 4
    %v729 = vld [vmem:[%s728] sm:$0xf]
    %v731 = vlaneseq
    %v732 = vshrl.u32 %v731, 7
    %v733 = vsub.s32 0, %v732
    %v734 = vrot.slane %v729, %v733
    %v735 = vlaneseq
    %v736 = vshrl.u32 %v735, 7
    %v737 = vsub.s32 2, %v736
    %v738 = vrot.slane %v729, %v737
    %v741 = vlaneseq
    %v742 = vshrl.u32 %v741, 7
    %v743 = vsub.s32 0, %v742
    %v744 = vrot.slane %v734, %v743
    %v745 = vlaneseq
    %v746 = vshrl.u32 %v745, 7
    %v747 = vsub.s32 0, %v746
    %v748 = vrot.slane %v738, %v747
    %v749 = vmul.f32 %v67, %v744
    %v750 = vmul.f32 %v67, %v748
    %v751 = vadd.f32 %v92, %v749
    %v752 = vadd.f32 %v92, %v750
    %v753 = vlaneseq
    %v754 = vshrl.u32 %v753, 7
    %v755 = vsub.s32 1, %v754
    %v756 = vrot.slane %v729, %v755
    %v757 = vlaneseq
    %v758 = vshrl.u32 %v757, 7
    %v759 = vsub.s32 3, %v758
    %v760 = vrot.slane %v729, %v759
    %v763 = vlaneseq
    %v764 = vshrl.u32 %v763, 7
    %v765 = vsub.s32 1, %v764
    %v766 = vrot.slane %v756, %v765
    %v767 = vlaneseq
    %v768 = vshrl.u32 %v767, 7
    %v769 = vsub.s32 1, %v768
    %v770 = vrot.slane %v760, %v769
    %v771 = vmul.f32 %v98, %v766
    %v772 = vmul.f32 %v98, %v770
    %v773 = vadd.f32 %v751, %v771
    %v774 = vadd.f32 %v752, %v772
    %v775 = vmax.f32 %v773, 0.0
    %v776 = vmax.f32 %v774, 0.0
    %777 = vmatprep.subr.mxu0 %v776
    %778 = vmatpush1.msra.mxu0 %v775
    %779 = vmatprep.subr.mxu0 0.0
    %780 = vmatpush1.msra.mxu0 0.0
    %781 = vmatprep.subr.mxu0 0.0
    %782 = vmatpush1.msra.mxu0 0.0
    %783 = vmatprep.subr.mxu0 0.0
    %784 = vmatpush1.msra.mxu0 0.0
    %785 = vmatprep.subr.mxu0 0.0
    %786 = vmatpush1.msra.mxu0 0.0
    %787 = vmatprep.subr.mxu0 0.0
    %788 = vmatpush1.msra.mxu0 0.0
    %789 = vmatprep.subr.mxu0 0.0
    %790 = vmatpush1.msra.mxu0 0.0
    %791 = vmatprep.subr.mxu0 0.0
    %792 = vmatpush1.msra.mxu0 0.0
    %793 = vmatprep.subr.mxu0 0.0
    %794 = vmatpush1.msra.mxu0 0.0
    %795 = vmatprep.subr.mxu0 0.0
    %796 = vmatpush1.msra.mxu0 0.0
    %797 = vmatprep.subr.mxu0 0.0
    %798 = vmatpush1.msra.mxu0 0.0
    %799 = vmatprep.subr.mxu0 0.0
    %800 = vmatpush1.msra.mxu0 0.0
    %801 = vmatprep.subr.mxu0 0.0
    %802 = vmatpush1.msra.mxu0 0.0
    %803 = vmatprep.subr.mxu0 0.0
    %804 = vmatpush1.msra.mxu0 0.0
    %805 = vmatprep.subr.mxu0 0.0
    %806 = vmatpush1.msra.mxu0 0.0
    %807 = vmatprep.subr.mxu0 0.0
    %808 = vmatpush1.msra.mxu0 0.0
    %809 = vmatprep.subr.mxu0 0.0
    %810 = vmatpush1.msra.mxu0 0.0
    %811 = vmatprep.subr.mxu0 0.0
    %812 = vmatpush1.msra.mxu0 0.0
    %813 = vmatprep.subr.mxu0 0.0
    %814 = vmatpush1.msra.mxu0 0.0
    %815 = vmatprep.subr.mxu0 0.0
    %816 = vmatpush1.msra.mxu0 0.0
    %817 = vmatprep.subr.mxu0 0.0
    %818 = vmatpush1.msra.mxu0 0.0
    %819 = vmatprep.subr.mxu0 0.0
    %820 = vmatpush1.msra.mxu0 0.0
    %821 = vmatprep.subr.mxu0 0.0
    %822 = vmatpush1.msra.mxu0 0.0
    %823 = vmatprep.subr.mxu0 0.0
    %824 = vmatpush1.msra.mxu0 0.0
    %825 = vmatprep.subr.mxu0 0.0
    %826 = vmatpush1.msra.mxu0 0.0
    %827 = vmatprep.subr.mxu0 0.0
    %828 = vmatpush1.msra.mxu0 0.0
    %829 = vmatprep.subr.mxu0 0.0
    %830 = vmatpush1.msra.mxu0 0.0
    %831 = vmatprep.subr.mxu0 0.0
    %832 = vmatpush1.msra.mxu0 0.0
    %833 = vmatprep.subr.mxu0 0.0
    %834 = vmatpush1.msra.mxu0 0.0
    %835 = vmatprep.subr.mxu0 0.0
    %836 = vmatpush1.msra.mxu0 0.0
    %837 = vmatprep.subr.mxu0 0.0
    %838 = vmatpush1.msra.mxu0 0.0
    %839 = vmatprep.subr.mxu0 0.0
    %840 = vmatpush1.msra.mxu0 0.0
    %841 = vmatprep.mubr.f32.mxu0 0.0
    %842 = vmatmul.mubr.f32.gmra.mrb[0].mxu0 %v146
    %v843 = vpop.f32.mrb[0].mxu0
    %v844 = vadd.f32 %v127, %v843
    %v845 = vpop.f32.mrb[0].mxu0
    %v846 = vadd.f32 %v127, %v845
    %847 = vmatprep.mubr.f32.mxu0 0.0
    %848 = vmatmul.mubr.f32.gmra.mrb[0].mxu0 %v149
    %v849 = vpop.f32.mrb[0].mxu0
    %v850 = vadd.f32 %v132, %v849
    %v851 = vpop.f32.mrb[0].mxu0
    %v852 = vadd.f32 %v132, %v851
    %853 = vmatprep.mubr.f32.mxu0 0.0
    %854 = vmatmul.mubr.f32.gmra.mrb[0].mxu0 %v152
    %v855 = vpop.f32.mrb[0].mxu0
    %v856 = vadd.f32 %v137, %v855
    %v857 = vpop.f32.mrb[0].mxu0
    %v858 = vadd.f32 %v137, %v857
    %859 = vmatprep.mubr.f32.mxu0 0.0
    %860 = vmatmul.mubr.f32.gmra.mrb[0].mxu0 %v155
    %v861 = vpop.f32.mrb[0].mxu0
    %v862 = vadd.f32 %v142, %v861
    %v863 = vpop.f32.mrb[0].mxu0
    %v864 = vadd.f32 %v142, %v863
    %865 = vdwg.mxu0
    %866 = vmatprep.subr.mxu0 %v846
    %867 = vmatpush1.msra.mxu0 %v844
    %868 = vmatprep.subr.mxu0 %v852
    %869 = vmatpush1.msra.mxu0 %v850
    %870 = vmatprep.subr.mxu0 %v858
    %871 = vmatpush1.msra.mxu0 %v856
    %872 = vmatprep.subr.mxu0 %v864
    %873 = vmatpush1.msra.mxu0 %v862
    %874 = vmatprep.subr.mxu0 0.0
    %875 = vmatpush1.msra.mxu0 0.0
    %876 = vmatprep.subr.mxu0 0.0
    %877 = vmatpush1.msra.mxu0 0.0
    %878 = vmatprep.subr.mxu0 0.0
    %879 = vmatpush1.msra.mxu0 0.0
    %880 = vmatprep.subr.mxu0 0.0
    %881 = vmatpush1.msra.mxu0 0.0
    %882 = vmatprep.subr.mxu0 0.0
    %883 = vmatpush1.msra.mxu0 0.0
    %884 = vmatprep.subr.mxu0 0.0
    %885 = vmatpush1.msra.mxu0 0.0
    %886 = vmatprep.subr.mxu0 0.0
    %887 = vmatpush1.msra.mxu0 0.0
    %888 = vmatprep.subr.mxu0 0.0
    %889 = vmatpush1.msra.mxu0 0.0
    %890 = vmatprep.subr.mxu0 0.0
    %891 = vmatpush1.msra.mxu0 0.0
    %892 = vmatprep.subr.mxu0 0.0
    %893 = vmatpush1.msra.mxu0 0.0
    %894 = vmatprep.subr.mxu0 0.0
    %895 = vmatpush1.msra.mxu0 0.0
    %896 = vmatprep.subr.mxu0 0.0
    %897 = vmatpush1.msra.mxu0 0.0
    %898 = vmatprep.subr.mxu0 0.0
    %899 = vmatpush1.msra.mxu0 0.0
    %900 = vmatprep.subr.mxu0 0.0
    %901 = vmatpush1.msra.mxu0 0.0
    %902 = vmatprep.subr.mxu0 0.0
    %903 = vmatpush1.msra.mxu0 0.0
    %904 = vmatprep.subr.mxu0 0.0
    %905 = vmatpush1.msra.mxu0 0.0
    %906 = vmatprep.subr.mxu0 0.0
    %907 = vmatpush1.msra.mxu0 0.0
    %908 = vmatprep.subr.mxu0 0.0
    %909 = vmatpush1.msra.mxu0 0.0
    %910 = vmatprep.subr.mxu0 0.0
    %911 = vmatpush1.msra.mxu0 0.0
    %912 = vmatprep.subr.mxu0 0.0
    %913 = vmatpush1.msra.mxu0 0.0
    %914 = vmatprep.subr.mxu0 0.0
    %915 = vmatpush1.msra.mxu0 0.0
    %916 = vmatprep.subr.mxu0 0.0
    %917 = vmatpush1.msra.mxu0 0.0
    %918 = vmatprep.subr.mxu0 0.0
    %919 = vmatpush1.msra.mxu0 0.0
    %920 = vmatprep.subr.mxu0 0.0
    %921 = vmatpush1.msra.mxu0 0.0
    %922 = vmatprep.subr.mxu0 0.0
    %923 = vmatpush1.msra.mxu0 0.0
    %924 = vmatprep.subr.mxu0 0.0
    %925 = vmatpush1.msra.mxu0 0.0
    %926 = vmatprep.subr.mxu0 0.0
    %927 = vmatpush1.msra.mxu0 0.0
    %928 = vmatprep.subr.mxu0 0.0
    %929 = vmatpush1.msra.mxu0 0.0
    %930 = vmatprep.mubr.f32.mxu0 0.0
    %931 = vmatmul.mubr.f32.gmra.mrb[0].mxu0 %v248
    %v932 = vpop.f32.mrb[0].mxu0
    %v933 = vadd.f32 0.0, %v932
    %v934 = vpop.f32.mrb[0].mxu0
    %v935 = vadd.f32 0.0, %v934
    %936 = vdwg.mxu0
    %v937 = vmul.f32 %v933, 0.17677669
    %v938 = vmul.f32 %v935, 0.17677669
    %v939 = vadd.f32 %v937, %v61
    %v940 = vadd.f32 %v938, %v62
    %v941 = vmax.f32 %v939, %v940
    %942 = vmax.xlane.f32.xlu0 %v941
    %v943 = vpop.xlane.xlu0 %942
    %v944 = vsub.f32 %v939, %v943
    %v945 = vsub.f32 %v940, %v943
    %v946 = vmul.f32 %v944, 1.442695
    %v947 = vpow.pop %v946
    %v948 = vmul.f32 %v945, 1.442695
    %v949 = vpow.pop %v948
    %v950 = vadd.f32 %v947, %v949
    %951 = vadd.xlane.f32.xlu0 %v950
    %v952 = vpop.xlane.xlu0 %951
    %v953 = vrcp.pop %v952
    %v954 = vmul.f32 %v947, %v953
    %v955 = vmul.f32 %v949, %v953
    %956 = vmatprep.subr.mxu0 %v846
    %957 = vmatpush1.xpose.msra.mxu0 %v844
    %958 = vmatprep.subr.mxu0 %v852
    %959 = vmatpush1.xpose.msra.mxu0 %v850
    %960 = vmatprep.subr.mxu0 %v858
    %961 = vmatpush1.xpose.msra.mxu0 %v856
    %962 = vmatprep.subr.mxu0 %v864
    %963 = vmatpush1.xpose.msra.mxu0 %v862
    %964 = vmatprep.subr.mxu0 0.0
    %965 = vmatpush1.xpose.msra.mxu0 0.0
    %966 = vmatprep.subr.mxu0 0.0
    %967 = vmatpush1.xpose.msra.mxu0 0.0
    %968 = vmatprep.subr.mxu0 0.0
    %969 = vmatpush1.xpose.msra.mxu0 0.0
    %970 = vmatprep.subr.mxu0 0.0
    %971 = vmatpush1.xpose.msra.mxu0 0.0
    %972 = vmatprep.subr.mxu0 0.0
    %973 = vmatpush1.xpose.msra.mxu0 0.0
    %974 = vmatprep.subr.mxu0 0.0
    %975 = vmatpush1.xpose.msra.mxu0 0.0
    %976 = vmatprep.subr.mxu0 0.0
    %977 = vmatpush1.xpose.msra.mxu0 0.0
    %978 = vmatprep.subr.mxu0 0.0
    %979 = vmatpush1.xpose.msra.mxu0 0.0
    %980 = vmatprep.subr.mxu0 0.0
    %981 = vmatpush1.xpose.msra.mxu0 0.0
    %982 = vmatprep.subr.mxu0 0.0
    %983 = vmatpush1.xpose.msra.mxu0 0.0
    %984 = vmatprep.subr.mxu0 0.0
    %985 = vmatpush1.xpose.msra.mxu0 0.0
    %986 = vmatprep.subr.mxu0 0.0
    %987 = vmatpush1.xpose.msra.mxu0 0.0
    %988 = vmatprep.subr.mxu0 0.0
    %989 = vmatpush1.xpose.msra.mxu0 0.0
    %990 = vmatprep.subr.mxu0 0.0
    %991 = vmatpush1.xpose.msra.mxu0 0.0
    %992 = vmatprep.subr.mxu0 0.0
    %993 = vmatpush1.xpose.msra.mxu0 0.0
    %994 = vmatprep.subr.mxu0 0.0
    %995 = vmatpush1.xpose.msra.mxu0 0.0
    %996 = vmatprep.subr.mxu0 0.0
    %997 = vmatpush1.xpose.msra.mxu0 0.0
    %998 = vmatprep.subr.mxu0 0.0
    %999 = vmatpush1.xpose.msra.mxu0 0.0
    %1000 = vmatprep.subr.mxu0 0.0
    %1001 = vmatpush1.xpose.msra.mxu0 0.0
    %1002 = vmatprep.subr.mxu0 0.0
    %1003 = vmatpush1.xpose.msra.mxu0 0.0
    %1004 = vmatprep.subr.mxu0 0.0
    %1005 = vmatpush1.xpose.msra.mxu0 0.0
    %1006 = vmatprep.subr.mxu0 0.0
    %1007 = vmatpush1.xpose.msra.mxu0 0.0
    %1008 = vmatprep.subr.mxu0 0.0
    %1009 = vmatpush1.xpose.msra.mxu0 0.0
    %1010 = vmatprep.subr.mxu0 0.0
    %1011 = vmatpush1.xpose.msra.mxu0 0.0
    %1012 = vmatprep.subr.mxu0 0.0
    %1013 = vmatpush1.xpose.msra.mxu0 0.0
    %1014 = vmatprep.subr.mxu0 0.0
    %1015 = vmatpush1.xpose.msra.mxu0 0.0
    %1016 = vmatprep.subr.mxu0 0.0
    %1017 = vmatpush1.xpose.msra.mxu0 0.0
    %1018 = vmatprep.subr.mxu0 0.0
    %1019 = vmatpush1.xpose.msra.mxu0 0.0
    %1020 = vmatprep.mubr.f32.mxu0 %v955
    %1021 = vmatmul.mubr.f32.gmra.mrb[0].mxu0 %v954
    %v1022 = vpop.f32.mrb[0].mxu0
    %v1023 = vadd.f32 0.0, %v1022
    %v1024 = vpop.f32.mrb[0].mxu0
    %1025 = vdwg.mxu0
    %v1026 = vadd.f32 %v31, %v1023
    %v1028 = vsel %vm246, %v1026, 0
    %1030 = vmatprep.subr.mxu0 0.0
    %1031 = vmatpush1.msra.mxu0 %v45
    %1032 = vmatprep.subr.mxu0 0.0
    %1033 = vmatpush1.msra.mxu0 %v46
    %1034 = vmatprep.subr.mxu0 0.0
    %1035 = vmatpush1.msra.mxu0 %v47
    %1036 = vmatprep.subr.mxu0 0.0
    %1037 = vmatpush1.msra.mxu0 %v48
    %1038 = vmatprep.subr.mxu0 0.0
    %1039 = vmatpush1.msra.mxu0 0.0
    %1040 = vmatprep.subr.mxu0 0.0
    %1041 = vmatpush1.msra.mxu0 0.0
    %1042 = vmatprep.subr.mxu0 0.0
    %1043 = vmatpush1.msra.mxu0 0.0
    %1044 = vmatprep.subr.mxu0 0.0
    %1045 = vmatpush1.msra.mxu0 0.0
    %1046 = vmatprep.subr.mxu0 0.0
    %1047 = vmatpush1.msra.mxu0 0.0
    %1048 = vmatprep.subr.mxu0 0.0
    %1049 = vmatpush1.msra.mxu0 0.0
    %1050 = vmatprep.subr.mxu0 0.0
    %1051 = vmatpush1.msra.mxu0 0.0
    %1052 = vmatprep.subr.mxu0 0.0
    %1053 = vmatpush1.msra.mxu0 0.0
    %1054 = vmatprep.subr.mxu0 0.0
    %1055 = vmatpush1.msra.mxu0 0.0
    %1056 = vmatprep.subr.mxu0 0.0
    %1057 = vmatpush1.msra.mxu0 0.0
    %1058 = vmatprep.subr.mxu0 0.0
    %1059 = vmatpush1.msra.mxu0 0.0
    %1060 = vmatprep.subr.mxu0 0.0
    %1061 = vmatpush1.msra.mxu0 0.0
    %1062 = vmatprep.subr.mxu0 0.0
    %1063 = vmatpush1.msra.mxu0 0.0
    %1064 = vmatprep.subr.mxu0 0.0
    %1065 = vmatpush1.msra.mxu0 0.0
    %1066 = vmatprep.subr.mxu0 0.0
    %1067 = vmatpush1.msra.mxu0 0.0
    %1068 = vmatprep.subr.mxu0 0.0
    %1069 = vmatpush1.msra.mxu0 0.0
    %1070 = vmatprep.subr.mxu0 0.0
    %1071 = vmatpush1.msra.mxu0 0.0
    %1072 = vmatprep.subr.mxu0 0.0
    %1073 = vmatpush1.msra.mxu0 0.0
    %1074 = vmatprep.subr.mxu0 0.0
    %1075 = vmatpush1.msra.mxu0 0.0
    %1076 = vmatprep.subr.mxu0 0.0
    %1077 = vmatpush1.msra.mxu0 0.0
    %1078 = vmatprep.subr.mxu0 0.0
    %1079 = vmatpush1.msra.mxu0 0.0
    %1080 = vmatprep.subr.mxu0 0.0
    %1081 = vmatpush1.msra.mxu0 0.0
    %1082 = vmatprep.subr.mxu0 0.0
    %1083 = vmatpush1.msra.mxu0 0.0
    %1084 = vmatprep.subr.mxu0 0.0
    %1085 = vmatpush1.msra.mxu0 0.0
    %1086 = vmatprep.subr.mxu0 0.0
    %1087 = vmatpush1.msra.mxu0 0.0
    %1088 = vmatprep.subr.mxu0 0.0
    %1089 = vmatpush1.msra.mxu0 0.0
    %1090 = vmatprep.subr.mxu0 0.0
    %1091 = vmatpush1.msra.mxu0 0.0
    %1092 = vmatprep.subr.mxu0 0.0
    %1093 = vmatpush1.msra.mxu0 0.0
    %1094 = vmatprep.mubr.f32.mxu0 0.0
    %1095 = vmatmul.mubr.f32.gmra.mrb[0].mxu0 %v1028
    %v1096 = vpop.f32.mrb[0].mxu0
    %v1097 = vadd.f32 %v414, %v1096
    %v1098 = vpop.f32.mrb[0].mxu0
    %1099 = vdwg.mxu0
    %1100 = vmatprep.subr.mxu0 0.0
    %1101 = vmatpush1.msra.mxu0 %v49
    %1102 = vmatprep.subr.mxu0 0.0
    %1103 = vmatpush1.msra.mxu0 %v50
    %1104 = vmatprep.subr.mxu0 0.0
    %1105 = vmatpush1.msra.mxu0 %v51
    %1106 = vmatprep.subr.mxu0 0.0
    %1107 = vmatpush1.msra.mxu0 %v52
    %1108 = vmatprep.subr.mxu0 0.0
    %1109 = vmatpush1.msra.mxu0 0.0
    %1110 = vmatprep.subr.mxu0 0.0
    %1111 = vmatpush1.msra.mxu0 0.0
    %1112 = vmatprep.subr.mxu0 0.0
    %1113 = vmatpush1.msra.mxu0 0.0
    %1114 = vmatprep.subr.mxu0 0.0
    %1115 = vmatpush1.msra.mxu0 0.0
    %1116 = vmatprep.subr.mxu0 0.0
    %1117 = vmatpush1.msra.mxu0 0.0
    %1118 = vmatprep.subr.mxu0 0.0
    %1119 = vmatpush1.msra.mxu0 0.0
    %1120 = vmatprep.subr.mxu0 0.0
    %1121 = vmatpush1.msra.mxu0 0.0
    %1122 = vmatprep.subr.mxu0 0.0
    %1123 = vmatpush1.msra.mxu0 0.0
    %1124 = vmatprep.subr.mxu0 0.0
    %1125 = vmatpush1.msra.mxu0 0.0
    %1126 = vmatprep.subr.mxu0 0.0
    %1127 = vmatpush1.msra.mxu0 0.0
    %1128 = vmatprep.subr.mxu0 0.0
    %1129 = vmatpush1.msra.mxu0 0.0
    %1130 = vmatprep.subr.mxu0 0.0
    %1131 = vmatpush1.msra.mxu0 0.0
    %1132 = vmatprep.subr.mxu0 0.0
    %1133 = vmatpush1.msra.mxu0 0.0
    %1134 = vmatprep.subr.mxu0 0.0
    %1135 = vmatpush1.msra.mxu0 0.0
    %1136 = vmatprep.subr.mxu0 0.0
    %1137 = vmatpush1.msra.mxu0 0.0
    %1138 = vmatprep.subr.mxu0 0.0
    %1139 = vmatpush1.msra.mxu0 0.0
    %1140 = vmatprep.subr.mxu0 0.0
    %1141 = vmatpush1.msra.mxu0 0.0
    %1142 = vmatprep.subr.mxu0 0.0
    %1143 = vmatpush1.msra.mxu0 0.0
    %1144 = vmatprep.subr.mxu0 0.0
    %1145 = vmatpush1.msra.mxu0 0.0
    %1146 = vmatprep.subr.mxu0 0.0
    %1147 = vmatpush1.msra.mxu0 0.0
    %1148 = vmatprep.subr.mxu0 0.0
    %1149 = vmatpush1.msra.mxu0 0.0
    %1150 = vmatprep.subr.mxu0 0.0
    %1151 = vmatpush1.msra.mxu0 0.0
    %1152 = vmatprep.subr.mxu0 0.0
    %1153 = vmatpush1.msra.mxu0 0.0
    %1154 = vmatprep.subr.mxu0 0.0
    %1155 = vmatpush1.msra.mxu0 0.0
    %1156 = vmatprep.subr.mxu0 0.0
    %1157 = vmatpush1.msra.mxu0 0.0
    %1158 = vmatprep.subr.mxu0 0.0
    %1159 = vmatpush1.msra.mxu0 0.0
    %1160 = vmatprep.subr.mxu0 0.0
    %1161 = vmatpush1.msra.mxu0 0.0
    %1162 = vmatprep.subr.mxu0 0.0
    %1163 = vmatpush1.msra.mxu0 0.0
    %1164 = vmatprep.mubr.f32.mxu0 0.0
    %1165 = vmatmul.mubr.f32.gmra.mrb[0].mxu0 %v1028
    %v1166 = vpop.f32.mrb[0].mxu0
    %v1167 = vadd.f32 %v491, %v1166
    %v1168 = vpop.f32.mrb[0].mxu0
    %1169 = vdwg.mxu0
    %v1170 = vmax.f32 %v1167, 0.0
    %v1172 = vsel %vm246, %v1170, 0
    %1174 = vmatprep.subr.mxu0 0.0
    %1175 = vmatpush1.msra.mxu0 %v53
    %1176 = vmatprep.subr.mxu0 0.0
    %1177 = vmatpush1.msra.mxu0 %v54
    %1178 = vmatprep.subr.mxu0 0.0
    %1179 = vmatpush1.msra.mxu0 %v55
    %1180 = vmatprep.subr.mxu0 0.0
    %1181 = vmatpush1.msra.mxu0 %v56
    %1182 = vmatprep.subr.mxu0 0.0
    %1183 = vmatpush1.msra.mxu0 0.0
    %1184 = vmatprep.subr.mxu0 0.0
    %1185 = vmatpush1.msra.mxu0 0.0
    %1186 = vmatprep.subr.mxu0 0.0
    %1187 = vmatpush1.msra.mxu0 0.0
    %1188 = vmatprep.subr.mxu0 0.0
    %1189 = vmatpush1.msra.mxu0 0.0
    %1190 = vmatprep.subr.mxu0 0.0
    %1191 = vmatpush1.msra.mxu0 0.0
    %1192 = vmatprep.subr.mxu0 0.0
    %1193 = vmatpush1.msra.mxu0 0.0
    %1194 = vmatprep.subr.mxu0 0.0
    %1195 = vmatpush1.msra.mxu0 0.0
    %1196 = vmatprep.subr.mxu0 0.0
    %1197 = vmatpush1.msra.mxu0 0.0
    %1198 = vmatprep.subr.mxu0 0.0
    %1199 = vmatpush1.msra.mxu0 0.0
    %1200 = vmatprep.subr.mxu0 0.0
    %1201 = vmatpush1.msra.mxu0 0.0
    %1202 = vmatprep.subr.mxu0 0.0
    %1203 = vmatpush1.msra.mxu0 0.0
    %1204 = vmatprep.subr.mxu0 0.0
    %1205 = vmatpush1.msra.mxu0 0.0
    %1206 = vmatprep.subr.mxu0 0.0
    %1207 = vmatpush1.msra.mxu0 0.0
    %1208 = vmatprep.subr.mxu0 0.0
    %1209 = vmatpush1.msra.mxu0 0.0
    %1210 = vmatprep.subr.mxu0 0.0
    %1211 = vmatpush1.msra.mxu0 0.0
    %1212 = vmatprep.subr.mxu0 0.0
    %1213 = vmatpush1.msra.mxu0 0.0
    %1214 = vmatprep.subr.mxu0 0.0
    %1215 = vmatpush1.msra.mxu0 0.0
    %1216 = vmatprep.subr.mxu0 0.0
    %1217 = vmatpush1.msra.mxu0 0.0
    %1218 = vmatprep.subr.mxu0 0.0
    %1219 = vmatpush1.msra.mxu0 0.0
    %1220 = vmatprep.subr.mxu0 0.0
    %1221 = vmatpush1.msra.mxu0 0.0
    %1222 = vmatprep.subr.mxu0 0.0
    %1223 = vmatpush1.msra.mxu0 0.0
    %1224 = vmatprep.subr.mxu0 0.0
    %1225 = vmatpush1.msra.mxu0 0.0
    %1226 = vmatprep.subr.mxu0 0.0
    %1227 = vmatpush1.msra.mxu0 0.0
    %1228 = vmatprep.subr.mxu0 0.0
    %1229 = vmatpush1.msra.mxu0 0.0
    %1230 = vmatprep.subr.mxu0 0.0
    %1231 = vmatpush1.msra.mxu0 0.0
    %1232 = vmatprep.subr.mxu0 0.0
    %1233 = vmatpush1.msra.mxu0 0.0
    %1234 = vmatprep.subr.mxu0 0.0
    %1235 = vmatpush1.msra.mxu0 0.0
    %1236 = vmatprep.subr.mxu0 0.0
    %1237 = vmatpush1.msra.mxu0 0.0
    %1238 = vmatprep.mubr.f32.mxu0 0.0
    %1239 = vmatmul.mubr.f32.gmra.mrb[0].mxu0 %v1172
    %v1240 = vpop.f32.mrb[0].mxu0
    %v1241 = vadd.f32 %v566, %v1240
    %v1242 = vpop.f32.mrb[0].mxu0
    %1243 = vdwg.mxu0
    %v1244 = vmax.f32 %v1241, 0.0
    %v1246 = vsel %vm246, %v1244, 0
    %1248 = vmatprep.subr.mxu0 0.0
    %1249 = vmatpush1.msra.mxu0 %v57
    %1250 = vmatprep.subr.mxu0 0.0
    %1251 = vmatpush1.msra.mxu0 %v58
    %1252 = vmatprep.subr.mxu0 0.0
    %1253 = vmatpush1.msra.mxu0 %v59
    %1254 = vmatprep.subr.mxu0 0.0
    %1255 = vmatpush1.msra.mxu0 %v60
    %1256 = vmatprep.subr.mxu0 0.0
    %1257 = vmatpush1.msra.mxu0 0.0
    %1258 = vmatprep.subr.mxu0 0.0
    %1259 = vmatpush1.msra.mxu0 0.0
    %1260 = vmatprep.subr.mxu0 0.0
    %1261 = vmatpush1.msra.mxu0 0.0
    %1262 = vmatprep.subr.mxu0 0.0
    %1263 = vmatpush1.msra.mxu0 0.0
    %1264 = vmatprep.subr.mxu0 0.0
    %1265 = vmatpush1.msra.mxu0 0.0
    %1266 = vmatprep.subr.mxu0 0.0
    %1267 = vmatpush1.msra.mxu0 0.0
    %1268 = vmatprep.subr.mxu0 0.0
    %1269 = vmatpush1.msra.mxu0 0.0
    %1270 = vmatprep.subr.mxu0 0.0
    %1271 = vmatpush1.msra.mxu0 0.0
    %1272 = vmatprep.subr.mxu0 0.0
    %1273 = vmatpush1.msra.mxu0 0.0
    %1274 = vmatprep.subr.mxu0 0.0
    %1275 = vmatpush1.msra.mxu0 0.0
    %1276 = vmatprep.subr.mxu0 0.0
    %1277 = vmatpush1.msra.mxu0 0.0
    %1278 = vmatprep.subr.mxu0 0.0
    %1279 = vmatpush1.msra.mxu0 0.0
    %1280 = vmatprep.subr.mxu0 0.0
    %1281 = vmatpush1.msra.mxu0 0.0
    %1282 = vmatprep.subr.mxu0 0.0
    %1283 = vmatpush1.msra.mxu0 0.0
    %1284 = vmatprep.subr.mxu0 0.0
    %1285 = vmatpush1.msra.mxu0 0.0
    %1286 = vmatprep.subr.mxu0 0.0
    %1287 = vmatpush1.msra.mxu0 0.0
    %1288 = vmatprep.subr.mxu0 0.0
    %1289 = vmatpush1.msra.mxu0 0.0
    %1290 = vmatprep.subr.mxu0 0.0
    %1291 = vmatpush1.msra.mxu0 0.0
    %1292 = vmatprep.subr.mxu0 0.0
    %1293 = vmatpush1.msra.mxu0 0.0
    %1294 = vmatprep.subr.mxu0 0.0
    %1295 = vmatpush1.msra.mxu0 0.0
    %1296 = vmatprep.subr.mxu0 0.0
    %1297 = vmatpush1.msra.mxu0 0.0
    %1298 = vmatprep.subr.mxu0 0.0
    %1299 = vmatpush1.msra.mxu0 0.0
    %1300 = vmatprep.subr.mxu0 0.0
    %1301 = vmatpush1.msra.mxu0 0.0
    %1302 = vmatprep.subr.mxu0 0.0
    %1303 = vmatpush1.msra.mxu0 0.0
    %1304 = vmatprep.subr.mxu0 0.0
    %1305 = vmatpush1.msra.mxu0 0.0
    %1306 = vmatprep.subr.mxu0 0.0
    %1307 = vmatpush1.msra.mxu0 0.0
    %1308 = vmatprep.subr.mxu0 0.0
    %1309 = vmatpush1.msra.mxu0 0.0
    %1310 = vmatprep.subr.mxu0 0.0
    %1311 = vmatpush1.msra.mxu0 0.0
    %1312 = vmatprep.mubr.f32.mxu0 0.0
    %1313 = vmatmul.mubr.f32.gmra.mrb[0].mxu0 %v1246
    %v1314 = vpop.f32.mrb[0].mxu0
    %v1315 = vadd.f32 %v644, %v1314
    %v1316 = vpop.f32.mrb[0].mxu0
    %1317 = vdwg.mxu0
    %v1318 = vxor.u32 %v1315, 2147483648
    %v1319 = vmul.f32 %v1318, 1.442695
    %v1320 = vpow.pop %v1319
    %v1321 = vadd.f32 %v1320, 1.0
    %v1322 = vrcp.pop %v1321
    %v1323 = vmul.f32 1.0, %v1322
    %v1324 = vsel %vm246, %v1026, 0.0
    %s1325 = scalar_lea.vmem %s4, 24
    %1326 = vst [vmem:[%s1325] sm:$0xff] %v1324
    %1327 = vst [vmem:[%s1325 + $0x8] sm:$0xff] %v1097
    %1328 = vst [vmem:[%s1325 + $0x10] sm:$0xff] %v1323
    // Predicated region
    $region22: #{relationformer_forward.1} parent=1 // pred_check
      _
    $region23: #{relationformer_forward.1} parent=1 // pred_check_branch
      %1330 = sbr.rel (0) target = $region25
    $region24: #{relationformer_forward.1} parent=1 // pred_region
      _
    $region25: #{relationformer_forward.1} parent=1 // pred_fallthru
      _
    // Predicated region
    $region26: #{relationformer_forward.1} parent=1 // pred_check
      _
    $region27: #{relationformer_forward.1} parent=1 // pred_check_branch
      %1332 = sbr.rel (0) target = $region29
    $region28: #{relationformer_forward.1} parent=1 // pred_region
      _
    $region29: #{relationformer_forward.1} parent=1 // pred_fallthru
      _
    %1333 = vsyncpa [#allocation3], 1

</llo_original>
